<compile_context>
chip_gen: v5e
topology: v5e:2x2
jax: 0.10.0
libtpu: 0.0.40
codegen_flags: <defaults>
</compile_context>

<pallas_src>
import functools

import numpy as np
import jax
import jax.numpy as jnp
from jax.experimental import pallas as pl
from jax.experimental.pallas import tpu as pltpu

_VMEM_LIMIT = 48 * 1024 * 1024   # safe on v7x (64 MiB physical) and v5e/v6e.


def _round_up(x, m):
    return ((int(x) + m - 1) // m) * m


def _bucket_pow2(x, base):
    """Round x up to base * next_power_of_two(ceil(x/base)) to limit recompiles."""
    n = max(1, -(-int(x) // base))
    p = 1
    while p < n:
        p *= 2
    return base * p


# ----------------------------------------------------------------------------
# Pallas kernels
# ----------------------------------------------------------------------------
def _points_nms_kernel(x_ref, o_ref, *, h_pad):
    """sigmoid + 2x2 stride-1 max-pool (pad=1) local-max suppression.

    Input is a stack of heatmaps flattened to rows: (maps * h_pad, W_pad).
    The first row of every map is detected in-kernel (iota % h_pad == 0) so
    rolls never leak across maps and no extra lane-sparse operand is needed.
    """
    x = x_ref[...]                                   # (R, Wp) logits
    h = jax.nn.sigmoid(x)
    row = jax.lax.broadcasted_iota(jnp.int32, h.shape, 0)
    first_row = (row % h_pad) == 0
    col = jax.lax.broadcasted_iota(jnp.int32, h.shape, 1)
    first_col = col == 0
    # sigmoid > 0, so -1 acts as -inf padding (same as max_pool2d's pad).
    up = jnp.where(first_row, -1.0, pltpu.roll(h, 1, 0))        # h[i-1, j]
    left = jnp.where(first_col, -1.0, pltpu.roll(h, 1, 1))      # h[i,   j-1]
    upleft = jnp.where(first_row, -1.0, pltpu.roll(left, 1, 0))  # h[i-1, j-1]
    m = jnp.maximum(jnp.maximum(h, up), jnp.maximum(left, upleft))
    # exact float equality matches PyTorch's max_pool-compare semantics.
    o_ref[...] = h * (m == h).astype(h.dtype)


def _mask_conv_kernel(k_ref, f_ref, bin_ref, summask_ref, segnum_ref,
                      *, mask_threshold):
    """Dynamic 1x1 conv (bf16 MXU, f32 acc) + threshold + fused reductions.

    Only the int8 binary mask and the two per-candidate f32 reductions go to
    HBM; the full soft-mask tensor is never written (recomputed later for the
    few finally-kept candidates).
    """
    t = pl.program_id(1)

    @pl.when(t == 0)
    def _():
        summask_ref[...] = jnp.zeros_like(summask_ref)
        segnum_ref[...] = jnp.zeros_like(segnum_ref)

    logits = jnp.dot(k_ref[...], f_ref[...],
                     preferred_element_type=jnp.float32)        # (TI, T_HW) f32
    sig = jax.nn.sigmoid(logits)
    mask_b = sig > mask_threshold                               # f32 threshold
    mask_f = mask_b.astype(jnp.float32)
    bin_ref[...] = mask_b.astype(bin_ref.dtype)                 # int8 0/1
    summask_ref[...] += jnp.sum(mask_f, axis=1, keepdims=True)  # (TI, 1)
    segnum_ref[...] += jnp.sum(sig * mask_f, axis=1, keepdims=True)


def _sig_recompute_kernel(k_ref, f_ref, sig_ref):
    """Small second pass: soft masks for the finally-kept candidates only."""
    logits = jnp.dot(k_ref[...], f_ref[...],
                     preferred_element_type=jnp.float32)
    sig_ref[...] = jax.nn.sigmoid(logits)                       # f32 out


def _matrix_nms_kernel(seg_ref, sum_ref, lab_ref, score_ref, valid_ref,
                       out_ref, inter_acc, *, sigma):
    """SOLOv2 matrix NMS: HW-tiled Gram matmul + fused IoU decay."""
    t = pl.program_id(0)

    @pl.when(t == 0)
    def _():
        inter_acc[...] = jnp.zeros_like(inter_acc)

    # int8 0/1 masks read from HBM (half the bytes); cast in-VMEM for the MXU.
    seg = seg_ref[...].astype(jnp.bfloat16)                     # (n, T)
    inter_acc[...] += jax.lax.dot_general(
        seg, seg, (((1,), (1,)), ((), ())), preferred_element_type=jnp.float32)

    @pl.when(t == pl.num_programs(0) - 1)
    def _():
        inter = inter_acc[...]                                  # (n, n)
        sm = sum_ref[...]                                       # (1, n)
        lab = lab_ref[...]                                      # (1, n)
        valid = valid_ref[...]                                  # (1, n)
        sc = score_ref[...]                                     # (1, n)
        n = inter.shape[0]
        union = sm + sm.T - inter
        union = jnp.where(union > 0.0, union, 1.0)              # padded rows: 0/1
        iou = inter / union                                     # exact (runs once)
        ri = jax.lax.broadcasted_iota(jnp.int32, (n, n), 0)
        ci = jax.lax.broadcasted_iota(jnp.int32, (n, n), 1)
        keep_pair = (ci > ri) & (lab.T == lab)                  # triu & same label
        decay_iou = jnp.where(keep_pair, iou, 0.0)
        comp = jnp.max(decay_iou, axis=0, keepdims=True)        # (1, n): comp[j]
        # min_i exp(-s*d^2)/exp(-s*c_i^2) == exp(-s * max_i (d[i,j]^2 - c_i^2))
        arg = decay_iou * decay_iou - (comp * comp).T           # (n, n)
        arg = jnp.where(valid.T > 0.0, arg, -jnp.inf)           # mask padded rows
        coeff = jnp.exp(-sigma * jnp.max(arg, axis=0, keepdims=True))  # (1, n)
        out_ref[...] = sc * coeff


# ----------------------------------------------------------------------------
# lru-cached, jit-wrapped pallas_call factories (no recompiles on repeat shapes)
# ----------------------------------------------------------------------------
@functools.lru_cache(maxsize=None)
def _get_points_nms_fn(n_blocks, rows_blk, w_pad, h_pad):
    total_rows = n_blocks * rows_blk
    fn = pl.pallas_call(
        functools.partial(_points_nms_kernel, h_pad=h_pad),
        grid=(n_blocks,),
        out_shape=jax.ShapeDtypeStruct((total_rows, w_pad), jnp.float32),
        in_specs=[pl.BlockSpec((rows_blk, w_pad), lambda g: (g, 0))],
        out_specs=pl.BlockSpec((rows_blk, w_pad), lambda g: (g, 0)),
        compiler_params=pltpu.CompilerParams(
            dimension_semantics=("parallel",),
            vmem_limit_bytes=_VMEM_LIMIT),
    )
    return jax.jit(fn)


@functools.lru_cache(maxsize=None)
def _get_mask_conv_fn(i_pad, ti, cin_pad, hw_pad, t_hw, mask_threshold):
    grid = (i_pad // ti, hw_pad // t_hw)
    fn = pl.pallas_call(
        functools.partial(_mask_conv_kernel, mask_threshold=float(mask_threshold)),
        grid=grid,
        out_shape=(jax.ShapeDtypeStruct((i_pad, hw_pad), jnp.int8),
                   jax.ShapeDtypeStruct((i_pad, 1), jnp.float32),
                   jax.ShapeDtypeStruct((i_pad, 1), jnp.float32)),
        in_specs=[pl.BlockSpec((ti, cin_pad), lambda i, t: (i, 0)),
                  pl.BlockSpec((cin_pad, t_hw), lambda i, t: (0, t))],
        out_specs=[pl.BlockSpec((ti, t_hw), lambda i, t: (i, t)),
                   pl.BlockSpec((ti, 1), lambda i, t: (i, 0)),
                   pl.BlockSpec((ti, 1), lambda i, t: (i, 0))],
        compiler_params=pltpu.CompilerParams(
            dimension_semantics=("parallel", "arbitrary"),
            vmem_limit_bytes=_VMEM_LIMIT),
    )
    return jax.jit(fn)


@functools.lru_cache(maxsize=None)
def _get_sig_recompute_fn(m_pad, cin_pad, hw_pad, t_hw):
    fn = pl.pallas_call(
        _sig_recompute_kernel,
        grid=(hw_pad // t_hw,),
        out_shape=jax.ShapeDtypeStruct((m_pad, hw_pad), jnp.float32),
        in_specs=[pl.BlockSpec((m_pad, cin_pad), lambda t: (0, 0)),
                  pl.BlockSpec((cin_pad, t_hw), lambda t: (0, t))],
        out_specs=pl.BlockSpec((m_pad, t_hw), lambda t: (0, t)),
        compiler_params=pltpu.CompilerParams(
            dimension_semantics=("parallel",),
            vmem_limit_bytes=_VMEM_LIMIT),
    )
    return jax.jit(fn)


@functools.lru_cache(maxsize=None)
def _get_matrix_nms_fn(n_pad, hw_pad, t_hw, sigma):
    fn = pl.pallas_call(
        functools.partial(_matrix_nms_kernel, sigma=float(sigma)),
        grid=(hw_pad // t_hw,),
        out_shape=jax.ShapeDtypeStruct((1, n_pad), jnp.float32),
        in_specs=[pl.BlockSpec((n_pad, t_hw), lambda t: (0, t)),
                  pl.BlockSpec((1, n_pad), lambda t: (0, 0)),
                  pl.BlockSpec((1, n_pad), lambda t: (0, 0)),
                  pl.BlockSpec((1, n_pad), lambda t: (0, 0)),
                  pl.BlockSpec((1, n_pad), lambda t: (0, 0))],
        out_specs=pl.BlockSpec((1, n_pad), lambda t: (0, 0)),
        scratch_shapes=[pltpu.VMEM((n_pad, n_pad), jnp.float32)],
        compiler_params=pltpu.CompilerParams(
            dimension_semantics=("arbitrary",),
            vmem_limit_bytes=_VMEM_LIMIT),
    )
    return jax.jit(fn)


# ----------------------------------------------------------------------------
# Plain-JAX glue
# ----------------------------------------------------------------------------
def _bilinear_align_corners(x, out_h, out_w):
    # TODO(synk): bilinear resize (F.interpolate align_corners=True) kept in plain JAX.
    c, h, w = x.shape

    def coords(out_sz, in_sz):
        if out_sz == 1:
            return jnp.zeros((1,), jnp.float32)
        scale = float(in_sz - 1) / float(out_sz - 1)
        return jnp.arange(out_sz, dtype=jnp.float32) * scale

    ys = coords(out_h, h)
    xs = coords(out_w, w)
    y0 = jnp.clip(jnp.floor(ys).astype(jnp.int32), 0, h - 1)
    x0 = jnp.clip(jnp.floor(xs).astype(jnp.int32), 0, w - 1)
    y1 = jnp.minimum(y0 + 1, h - 1)
    x1 = jnp.minimum(x0 + 1, w - 1)
    wy = (ys - y0.astype(jnp.float32))[None, :, None]
    wx = (xs - x0.astype(jnp.float32))[None, None, :]
    a = x[:, y0, :][:, :, x0]
    b = x[:, y0, :][:, :, x1]
    c_ = x[:, y1, :][:, :, x0]
    d = x[:, y1, :][:, :, x1]
    top = a * (1.0 - wx) + b * wx
    bot = c_ * (1.0 - wx) + d * wx
    return top * (1.0 - wy) + bot * wy


@functools.lru_cache(maxsize=None)
def _get_resize_fn(out_h, out_w):
    return jax.jit(functools.partial(_bilinear_align_corners,
                                     out_h=out_h, out_w=out_w))


def _points_nms_all_levels(cate_preds):
    """One fused, lane-dense points-NMS call over all FPN levels and batch."""
    b = int(cate_preds[0].shape[0])
    shapes = [(int(cp.shape[1]), int(cp.shape[2]), int(cp.shape[3]))
              for cp in cate_preds]
    h_pad = _round_up(max(h for _, h, _ in shapes), 8)
    w_pad = _round_up(max(w for _, _, w in shapes), 128)
    slabs = []
    for cp, (c, h, w) in zip(cate_preds, shapes):
        x = cp.astype(jnp.float32).reshape(b * c, h, w)
        slabs.append(jnp.pad(x, ((0, 0), (0, h_pad - h), (0, w_pad - w))))
    x_all = jnp.concatenate(slabs, axis=0)                      # (maps, Hp, Wp)
    n_maps = int(x_all.shape[0])
    bytes_per_map = h_pad * w_pad * 4
    # ~4 MiB blocks -> the whole slab runs in 1 step at small sizes, a handful
    # of steps for full SOLOv2 grids; well inside double-buffered VMEM budget.
    maps_per_block = max(1, min(n_maps, (4 * 1024 * 1024) // bytes_per_map))
    n_maps_pad = _round_up(n_maps, maps_per_block)
    if n_maps_pad > n_maps:
        x_all = jnp.pad(x_all, ((0, n_maps_pad - n_maps), (0, 0), (0, 0)))
    rows_blk = maps_per_block * h_pad
    n_blocks = n_maps_pad // maps_per_block
    x2d = x_all.reshape(n_maps_pad * h_pad, w_pad)

    out = _get_points_nms_fn(n_blocks, rows_blk, w_pad, h_pad)(x2d)

    out = out.reshape(n_maps_pad, h_pad, w_pad)
    results, off = [], 0
    for cp, (c, h, w) in zip(cate_preds, shapes):
        cur = out[off: off + b * c, :h, :w].reshape(b, c, h, w)
        results.append(jnp.transpose(cur, (0, 2, 3, 1)))        # NHWC
        off += b * c
    return results


class SOLOV2DecoderPallas:

    def __init__(self, strides=(8, 8, 16, 32, 32), grid_nums=(40, 36, 24, 16, 12),
                 mask_feature_upsample_scale=4, max_mask_num=100, topn=500,
                 min_score_threshold=0.1, keep_score_threshold=0.1,
                 mask_threshold=0.5, update_threshold=0.05):
        self.strides = strides
        self.grid_nums = grid_nums
        self.mask_feature_upsample_scale = mask_feature_upsample_scale
        self.max_mask_num = max_mask_num
        self.topn = topn
        self.min_score_threshold = min_score_threshold
        self.keep_score_threshold = keep_score_threshold
        self.mask_threshold = mask_threshold
        self.update_threshold = update_threshold

    def __call__(self, preds, scaled_sizes, origin_sizes):
        mask_feat_pred, kernel_preds, cate_preds = preds
        batch_size = int(mask_feat_pred.shape[0])
        level_nums = len(cate_preds)
        assert len(self.grid_nums) == level_nums
        cin = int(mask_feat_pred.shape[1])
        hm, wm = int(mask_feat_pred.shape[2]), int(mask_feat_pred.shape[3])
        hw = hm * wm
        input_h = hm * self.mask_feature_upsample_scale
        input_w = wm * self.mask_feature_upsample_scale

        # --- batch-level device preprocessing -------------------------------
        cate_nms = _points_nms_all_levels(cate_preds)            # fused kernel
        kernel_perm = [jnp.transpose(kp, (0, 2, 3, 1)) for kp in kernel_preds]
        cate_flat_dev = jnp.concatenate(
            [c.reshape(batch_size, -1, c.shape[-1]) for c in cate_nms], axis=1)
        kern_flat_dev = jnp.concatenate(
            [k.reshape(batch_size, -1, k.shape[-1]) for k in kernel_perm], axis=1)

        cin_pad = _round_up(cin, 128)                            # lane-dense K
        t_hw = min(_round_up(hw, 128), 4096)
        hw_pad = _round_up(hw, t_hw)
        # Feature slab cast to bf16 + padded ONCE per batch (hoisted out of the
        # per-item mask-conv path).
        feat_pad_dev = jnp.pad(
            mask_feat_pred.reshape(batch_size, cin, hw).astype(jnp.bfloat16),
            ((0, 0), (0, cin_pad - cin), (0, hw_pad - hw)))

        cate_flat_np = np.asarray(cate_flat_dev)                 # single sync

        size_trans = np.cumsum(np.asarray(self.grid_nums, np.int64) ** 2)
        strides_all = np.ones(int(size_trans[-1]), np.float32)
        strides_all[: size_trans[0]] *= self.strides[0]
        for ind in range(1, level_nums):
            strides_all[size_trans[ind - 1]: size_trans[ind]] *= self.strides[ind]

        def empty_result():
            return (jnp.zeros((0, input_h, input_w), jnp.float32),
                    np.zeros(0, dtype=np.float32),
                    np.zeros(0, dtype=np.float32))

        results = [None] * batch_size
        state = [None] * batch_size

        # --- Phase A: launch all mask-conv calls before any host sync -------
        for b in range(batch_size):
            cate_flat = cate_flat_np[b]
            keep_bool = cate_flat > self.min_score_threshold
            scores0 = cate_flat[keep_bool].astype(np.float32)
            if scores0.shape[0] == 0:
                results[b] = empty_result()
                continue
            pos_idx, cls_idx = np.nonzero(keep_bool)
            num_i = int(pos_idx.shape[0])

            kerns = jnp.take(kern_flat_dev[b],
                             jnp.asarray(pos_idx.astype(np.int32)), axis=0)
            i_pad = _bucket_pow2(num_i, 128)
            # ti=256 fills the 256-wide MXU and halves feature re-reads, but
            # keep >= 2 parallel i-tiles so v7x megacore stays engaged.
            ti = 256 if i_pad >= 512 else min(i_pad, 128)
            k_p = jnp.pad(kerns.astype(jnp.bfloat16),
                          ((0, i_pad - num_i), (0, cin_pad - cin)))
            conv_fn = _get_mask_conv_fn(i_pad, ti, cin_pad, hw_pad, t_hw,
                                        self.mask_threshold)
            bin_dev, summask_dev, segnum_dev = conv_fn(k_p, feat_pad_dev[b])
            state[b] = dict(pos_idx=pos_idx, labels=cls_idx.astype(np.int64),
                            strides=strides_all[pos_idx], scores0=scores0,
                            num_i=num_i, kerns=kerns, bin=bin_dev,
                            summask=summask_dev, segnum=segnum_dev)

        # --- Phase B: sync reductions, host filter/sort/topn, launch NMS ----
        for b in range(batch_size):
            if results[b] is not None:
                continue
            st = state[b]
            num_i = st['num_i']
            sum_masks_all = np.asarray(st['summask'])[:num_i, 0]
            seg_num_all = np.asarray(st['segnum'])[:num_i, 0]

            keep_flag = sum_masks_all > st['strides']
            if not keep_flag.any():
                results[b] = empty_result()
                continue
            idx1 = np.nonzero(keep_flag)[0]
            sum_masks = sum_masks_all[idx1]
            seg_num = seg_num_all[idx1]
            scores = st['scores0'][idx1] * (seg_num / sum_masks)
            labels = st['labels'][idx1]

            order = np.argsort(-scores)
            if order.shape[0] > self.topn:
                order = order[: self.topn]
            idx2 = idx1[order]
            sum_masks = sum_masks[order]
            scores = scores[order]
            labels = labels[order]
            n = int(idx2.shape[0])
            n_pad = _bucket_pow2(n, 128)

            seg_sel = jnp.take(st['bin'], jnp.asarray(idx2.astype(np.int32)),
                               axis=0)                            # (n, hw_pad) int8
            seg_p = jnp.pad(seg_sel, ((0, n_pad - n), (0, 0)))
            sum_p = jnp.asarray(np.pad(sum_masks.astype(np.float32),
                                       (0, n_pad - n)).reshape(1, n_pad))
            lab_p = jnp.asarray(np.pad(labels.astype(np.float32), (0, n_pad - n),
                                       constant_values=-1.0).reshape(1, n_pad))
            sc_p = jnp.asarray(np.pad(scores.astype(np.float32),
                                      (0, n_pad - n)).reshape(1, n_pad))
            valid = jnp.asarray((np.arange(n_pad) < n)
                                .astype(np.float32).reshape(1, n_pad))
            nms_fn = _get_matrix_nms_fn(n_pad, hw_pad, t_hw, 2.0)
            st['nms_out'] = nms_fn(seg_p, sum_p, lab_p, sc_p, valid)
            st['idx2'] = idx2
            st['labels2'] = labels
            st['n'] = n

        # --- Phase C: sync NMS, final filtering, soft-mask recompute + resize
        for b in range(batch_size):
            if results[b] is not None:
                continue
            st = state[b]
            n = st['n']
            new_scores = np.asarray(st['nms_out'])[0, :n]
            labels = st['labels2']

            keep2 = new_scores >= self.update_threshold
            if not keep2.any():
                results[b] = empty_result()
                continue
            idx3 = st['idx2'][keep2]
            new_scores = new_scores[keep2]
            labels = labels[keep2]

            keep3 = new_scores >= self.keep_score_threshold
            idx4 = idx3[keep3]
            new_scores = new_scores[keep3]
            labels = labels[keep3]
            if idx4.shape[0] == 0:
                results[b] = empty_result()
                continue

            order = np.argsort(-new_scores)
            if order.shape[0] > self.max_mask_num:
                order = order[: self.max_mask_num]
            idx5 = idx4[order]
            new_scores = new_scores[order]
            labels = labels[order]
            m = int(idx5.shape[0])
            m_pad = _bucket_pow2(max(m, 8), 8)

            # Recompute soft masks for only the kept candidates (tiny matmul).
            kern_final = jnp.take(st['kerns'],
                                  jnp.asarray(idx5.astype(np.int32)), axis=0)
            k_p2 = jnp.pad(kern_final.astype(jnp.bfloat16),
                           ((0, m_pad - m), (0, cin_pad - cin)))
            sig_fn = _get_sig_recompute_fn(m_pad, cin_pad, hw_pad, t_hw)
            sig_full = sig_fn(k_p2, feat_pad_dev[b])              # (m_pad, hw_pad) f32
            sig3 = sig_full[:, :hw].reshape(m_pad, hm, wm)

            up1 = _get_resize_fn(input_h, input_w)(sig3)
            sh, sw = int(scaled_sizes[b][0]), int(scaled_sizes[b][1])
            up1 = up1[:, :sh, :sw]
            oh, ow = int(origin_sizes[b][0]), int(origin_sizes[b][1])
            up2 = _get_resize_fn(oh, ow)(up1)
            masks = (up2 > self.mask_threshold).astype(jnp.uint8)[:m]

            results[b] = (masks, labels, new_scores.astype(np.float32))

        batch_masks = [results[b][0] for b in range(batch_size)]
        batch_labels = [results[b][1] for b in range(batch_size)]
        batch_scores = [results[b][2] for b in range(batch_size)]
        return batch_masks, batch_labels, batch_scores


if __name__ == "__main__":
    key = jax.random.PRNGKey(0)
    B, num_classes, kernel_planes = 2, 4, 8
    Hm = Wm = 16
    strides = (8, 16, 32)
    grid_nums = (10, 8, 6)

    k1, k2, k3 = jax.random.split(key, 3)
    mask_feat_pred = jax.random.normal(k1, (B, kernel_planes, Hm, Wm), jnp.float32)
    kkeys = jax.random.split(k2, len(grid_nums))
    ckeys = jax.random.split(k3, len(grid_nums))
    kernel_preds = [0.5 * jax.random.normal(kkeys[i], (B, kernel_planes, g, g),
                                            jnp.float32)
                    for i, g in enumerate(grid_nums)]
    cate_preds = [jax.random.normal(ckeys[i], (B, num_classes, g, g), jnp.float32)
                  for i, g in enumerate(grid_nums)]
    scaled_sizes = [[60, 56], [64, 48]]
    origin_sizes = [[50, 44], [58, 40]]

    decoder = SOLOV2DecoderPallas(strides=strides, grid_nums=grid_nums)
    batch_masks, batch_labels, batch_scores = decoder(
        (mask_feat_pred, kernel_preds, cate_preds), scaled_sizes, origin_sizes)

    for m in batch_masks:
        jax.block_until_ready(m)
    print("KERNEL_OK")
</pallas_src>

<mosaic_0001>
module attributes {stable_mosaic.version = 11 : i64} {
  func.func @_points_nms_kernel(%arg0: i32, %arg1: memref<384x128xf32, #tpu.memory_space<vmem>>, %arg2: memref<384x128xf32, #tpu.memory_space<vmem>>) attributes {dimension_semantics = [#tpu.dimension_semantics<parallel>], iteration_bounds = array<i64: 1>, scalar_prefetch = 0 : i64, scratch_operands = 0 : i64, tpu.core_type = #tpu.core_type<tc>, window_params = [{transform_indices = @transform_0, window_bounds = array<i64: 384, 128>}, {transform_indices = @transform_1, window_bounds = array<i64: 384, 128>}]} {
    %c0 = arith.constant 0 : index
    %c0_0 = arith.constant 0 : index
    %0 = vector.load %arg1[%c0, %c0_0] : memref<384x128xf32, #tpu.memory_space<vmem>>, vector<384x128xf32>
    %1 = arith.negf %0 : vector<384x128xf32>
    %2 = math.exp %1 : vector<384x128xf32>
    %cst = arith.constant 1.000000e+00 : f32
    %3 = vector.broadcast %cst : f32 to vector<384x128xf32>
    %4 = arith.addf %3, %2 : vector<384x128xf32>
    %5 = arith.divf %3, %4 : vector<384x128xf32>
    %6 = tpu.iota {dimensions = array<i32: 0>} : vector<384x128xi32>
    %c16_i32 = arith.constant 16 : i32
    %c0_i32 = arith.constant 0 : i32
    %7 = arith.cmpi eq, %c16_i32, %c0_i32 : i32
    %c1_i32 = arith.constant 1 : i32
    %8 = arith.select %7, %c1_i32, %c16_i32 : i32
    %9 = vector.broadcast %8 : i32 to vector<384x128xi32>
    %10 = arith.remsi %6, %9 : vector<384x128xi32>
    %c0_i32_1 = arith.constant 0 : i32
    %11 = vector.broadcast %c0_i32_1 : i32 to vector<384x128xi32>
    %12 = arith.cmpi ne, %10, %11 : vector<384x128xi32>
    %c0_i32_2 = arith.constant 0 : i32
    %13 = vector.broadcast %c0_i32_2 : i32 to vector<384x128xi32>
    %14 = arith.cmpi slt, %10, %13 : vector<384x128xi32>
    %c0_i32_3 = arith.constant 0 : i32
    %15 = arith.cmpi slt, %8, %c0_i32_3 : i32
    %16 = vector.broadcast %15 : i1 to vector<384x128xi1>
    %17 = vector.broadcast %16 : vector<384x128xi1> to vector<384x128xi1>
    %18 = arith.xori %14, %17 : vector<384x128xi1>
    %19 = arith.andi %18, %12 : vector<384x128xi1>
    %20 = vector.broadcast %8 : i32 to vector<384x128xi32>
    %21 = arith.addi %10, %20 : vector<384x128xi32>
    %22 = arith.select %19, %21, %10 : vector<384x128xi1>, vector<384x128xi32>
    %c0_i32_4 = arith.constant 0 : i32
    %23 = vector.broadcast %c0_i32_4 : i32 to vector<384x128xi32>
    %24 = arith.cmpi eq, %22, %23 : vector<384x128xi32>
    %25 = tpu.iota {dimensions = array<i32: 1>} : vector<384x128xi32>
    %c0_i32_5 = arith.constant 0 : i32
    %26 = vector.broadcast %c0_i32_5 : i32 to vector<384x128xi32>
    %27 = arith.cmpi eq, %25, %26 : vector<384x128xi32>
    %c1_i32_6 = arith.constant 1 : i32
    %28 = tpu.dynamic_rotate %5 by %c1_i32_6 dim 0 : vector<384x128xf32>, i32 -> vector<384x128xf32>
    %cst_7 = arith.constant -1.000000e+00 : f32
    %29 = vector.broadcast %cst_7 : f32 to vector<384x128xf32>
    %30 = arith.select %24, %29, %28 : vector<384x128xi1>, vector<384x128xf32>
    %c1_i32_8 = arith.constant 1 : i32
    %31 = tpu.dynamic_rotate %5 by %c1_i32_8 dim 1 : vector<384x128xf32>, i32 -> vector<384x128xf32>
    %cst_9 = arith.constant -1.000000e+00 : f32
    %32 = vector.broadcast %cst_9 : f32 to vector<384x128xf32>
    %33 = arith.select %27, %32, %31 : vector<384x128xi1>, vector<384x128xf32>
    %c1_i32_10 = arith.constant 1 : i32
    %34 = tpu.dynamic_rotate %33 by %c1_i32_10 dim 0 : vector<384x128xf32>, i32 -> vector<384x128xf32>
    %cst_11 = arith.constant -1.000000e+00 : f32
    %35 = vector.broadcast %cst_11 : f32 to vector<384x128xf32>
    %36 = arith.select %24, %35, %34 : vector<384x128xi1>, vector<384x128xf32>
    %37 = arith.maximumf %5, %30 : vector<384x128xf32>
    %38 = arith.maximumf %33, %36 : vector<384x128xf32>
    %39 = arith.maximumf %37, %38 : vector<384x128xf32>
    %40 = arith.cmpf oeq, %39, %5 : vector<384x128xf32>
    %41 = arith.extui %40 : vector<384x128xi1> to vector<384x128xi32>
    %42 = arith.sitofp %41 : vector<384x128xi32> to vector<384x128xf32>
    %43 = arith.mulf %5, %42 : vector<384x128xf32>
    %c0_12 = arith.constant 0 : index
    %c0_13 = arith.constant 0 : index
    %44 = vector.load %arg2[%c0_12, %c0_13] : memref<384x128xf32, #tpu.memory_space<vmem>>, vector<384x128xf32>
    tpu.vector_store %arg2[%c0_12, %c0_13], %43 {strides = array<i32>} : memref<384x128xf32, #tpu.memory_space<vmem>>, vector<384x128xf32>,
    return
  }
  func.func @transform_0(%arg0: i32) -> (i32, i32) {
    %c0_i32 = arith.constant 0 : i32
    %c0_i32_0 = arith.constant 0 : i32
    return %arg0, %c0_i32 : i32, i32
  }
  func.func @transform_1(%arg0: i32) -> (i32, i32) {
    %c0_i32 = arith.constant 0 : i32
    %c0_i32_0 = arith.constant 0 : i32
    return %arg0, %c0_i32 : i32, i32
  }
}

</mosaic_0001>

<llo_original>
// kernel: tpu_custom_call.1
$region0: #{tpu_custom_call.1}
  #allocation0 [shape = 'u32[]', space=smem, size = 0x4, offset = 0x4, fixed_abs, tag = 'smem constant byte address 0x4 - core index']
  #allocation1 [shape = 'u32[72,128]{1,0:T(1,128)}', space=vmem, size = 0x9000, scoped, tag = 'internal scratch']
  %s0 = inlined_call_operand.hbm [shape: f32[384,128], index: 0, kind: input, shape index: {}]
  %s1 = inlined_call_operand.hbm [shape: f32[384,128], index: 1, kind: output, shape index: {}]
  %s2 = sld [smem:[#allocation0]]
  $region18: #{tpu_custom_call.1} parent=0
    _
  %s4 = ssub.s32 1, %s2
  %s5 = scalar_select 0, %s4, %s2
  $region1: #{tpu_custom_call.1} parent=0
    #allocation2 [shape = 'u8[196608]{0}', space=vmem, size = 0x30000, scoped, tag = 'input window, operand 0, single buffered']
    #allocation3 [shape = 's32[1]{0}', space=sflag, size = 0x4, scoped, tag = 'scoped memory for tpu_custom_call.1']
    #allocation4 [shape = 's32[1]{0}', space=sflag, size = 0x4, scoped, tag = 'scoped memory for tpu_custom_call.1']
    #allocation5 [shape = 'u8[196608]{0}', space=vmem, size = 0x30000, scoped, tag = 'output window, operand 0, single buffered']
    %6 = vsyncpa [#allocation3], 0
    %7 = vsyncpa [#allocation4], 0
    // Predicated region
    $region2: #{tpu_custom_call.1} parent=1 // pred_check
      _
    $region3: #{tpu_custom_call.1} parent=1 // pred_check_branch
      %9 = sbr.rel (0) target = $region5
    $region4: #{tpu_custom_call.1} parent=1 // pred_region
      %11 = vsyncadd [#allocation3], 0
      %s12 = sshll.u32 %s0, 4
      %s13 = int_to_ptr.hbm [resolvable:$true] %s12
      %s14 = sshll.u32 [#allocation2], 4
      %s15 = int_to_ptr.vmem [resolvable:$true] %s14
      %20 = dma.hbm_to_vmem [thread:$0]  %s13, 6144, %s15, [#allocation3], 128, 128, 8
    $region5: #{tpu_custom_call.1} parent=1 // pred_fallthru
      _
    // Predicated region
    $region6: #{tpu_custom_call.1} parent=1 // pred_check
      _
    $region7: #{tpu_custom_call.1} parent=1 // pred_check_branch
      %22 = sbr.rel (0) target = $region9
    $region8: #{tpu_custom_call.1} parent=1 // pred_region
      %24 = dma.done [#allocation3], 6144
    $region9: #{tpu_custom_call.1} parent=1 // pred_fallthru
      _
    %v25 = vld [vmem:[#allocation2] sm:$0xff]
    %v26 = vld [vmem:[#allocation2 + $0x8] sm:$0xff]
    %v27 = vld [vmem:[#allocation2 + $0x10] sm:$0xff]
    %v28 = vld [vmem:[#allocation2 + $0x18] sm:$0xff]
    %v29 = vld [vmem:[#allocation2 + $0x20] sm:$0xff]
    %v30 = vld [vmem:[#allocation2 + $0x28] sm:$0xff]
    %v31 = vld [vmem:[#allocation2 + $0x30] sm:$0xff]
    %v32 = vld [vmem:[#allocation2 + $0x38] sm:$0xff]
    %v33 = vld [vmem:[#allocation2 + $0x40] sm:$0xff]
    %v34 = vld [vmem:[#allocation2 + $0x48] sm:$0xff]
    %v35 = vld [vmem:[#allocation2 + $0x50] sm:$0xff]
    %v36 = vld [vmem:[#allocation2 + $0x58] sm:$0xff]
    %v37 = vld [vmem:[#allocation2 + $0x60] sm:$0xff]
    %v38 = vld [vmem:[#allocation2 + $0x68] sm:$0xff]
    %v39 = vld [vmem:[#allocation2 + $0x70] sm:$0xff]
    %v40 = vld [vmem:[#allocation2 + $0x78] sm:$0xff]
    %v41 = vld [vmem:[#allocation2 + $0x80] sm:$0xff]
    %v42 = vld [vmem:[#allocation2 + $0x88] sm:$0xff]
    %v43 = vld [vmem:[#allocation2 + $0x90] sm:$0xff]
    %v44 = vld [vmem:[#allocation2 + $0x98] sm:$0xff]
    %v45 = vld [vmem:[#allocation2 + $0xa0] sm:$0xff]
    %v46 = vld [vmem:[#allocation2 + $0xa8] sm:$0xff]
    %v47 = vld [vmem:[#allocation2 + $0xb0] sm:$0xff]
    %v48 = vld [vmem:[#allocation2 + $0xb8] sm:$0xff]
    %v49 = vld [vmem:[#allocation2 + $0xc0] sm:$0xff]
    %v50 = vld [vmem:[#allocation2 + $0xc8] sm:$0xff]
    %v51 = vld [vmem:[#allocation2 + $0xd0] sm:$0xff]
    %v52 = vld [vmem:[#allocation2 + $0xd8] sm:$0xff]
    %v53 = vld [vmem:[#allocation2 + $0xe0] sm:$0xff]
    %v54 = vld [vmem:[#allocation2 + $0xe8] sm:$0xff]
    %v55 = vld [vmem:[#allocation2 + $0xf0] sm:$0xff]
    %v56 = vld [vmem:[#allocation2 + $0xf8] sm:$0xff]
    %v57 = vld [vmem:[#allocation2 + $0x100] sm:$0xff]
    %v58 = vld [vmem:[#allocation2 + $0x108] sm:$0xff]
    %v59 = vld [vmem:[#allocation2 + $0x110] sm:$0xff]
    %v60 = vld [vmem:[#allocation2 + $0x118] sm:$0xff]
    %v61 = vld [vmem:[#allocation2 + $0x120] sm:$0xff]
    %v62 = vld [vmem:[#allocation2 + $0x128] sm:$0xff]
    %v63 = vld [vmem:[#allocation2 + $0x130] sm:$0xff]
    %v64 = vld [vmem:[#allocation2 + $0x138] sm:$0xff]
    %v65 = vld [vmem:[#allocation2 + $0x140] sm:$0xff]
    %v66 = vld [vmem:[#allocation2 + $0x148] sm:$0xff]
    %v67 = vld [vmem:[#allocation2 + $0x150] sm:$0xff]
    %v68 = vld [vmem:[#allocation2 + $0x158] sm:$0xff]
    %v69 = vld [vmem:[#allocation2 + $0x160] sm:$0xff]
    %v70 = vld [vmem:[#allocation2 + $0x168] sm:$0xff]
    %v71 = vld [vmem:[#allocation2 + $0x170] sm:$0xff]
    %v72 = vld [vmem:[#allocation2 + $0x178] sm:$0xff]
    %v73 = vxor.u32 %v25, 2147483648
    %v74 = vxor.u32 %v26, 2147483648
    %v75 = vxor.u32 %v27, 2147483648
    %v76 = vxor.u32 %v28, 2147483648
    %v77 = vxor.u32 %v29, 2147483648
    %v78 = vxor.u32 %v30, 2147483648
    %v79 = vxor.u32 %v31, 2147483648
    %v80 = vxor.u32 %v32, 2147483648
    %v81 = vxor.u32 %v33, 2147483648
    %v82 = vxor.u32 %v34, 2147483648
    %v83 = vxor.u32 %v35, 2147483648
    %v84 = vxor.u32 %v36, 2147483648
    %v85 = vxor.u32 %v37, 2147483648
    %v86 = vxor.u32 %v38, 2147483648
    %v87 = vxor.u32 %v39, 2147483648
    %v88 = vxor.u32 %v40, 2147483648
    %v89 = vxor.u32 %v41, 2147483648
    %v90 = vxor.u32 %v42, 2147483648
    %v91 = vxor.u32 %v43, 2147483648
    %v92 = vxor.u32 %v44, 2147483648
    %v93 = vxor.u32 %v45, 2147483648
    %v94 = vxor.u32 %v46, 2147483648
    %v95 = vxor.u32 %v47, 2147483648
    %v96 = vxor.u32 %v48, 2147483648
    %v97 = vxor.u32 %v49, 2147483648
    %v98 = vxor.u32 %v50, 2147483648
    %v99 = vxor.u32 %v51, 2147483648
    %v100 = vxor.u32 %v52, 2147483648
    %v101 = vxor.u32 %v53, 2147483648
    %v102 = vxor.u32 %v54, 2147483648
    %v103 = vxor.u32 %v55, 2147483648
    %v104 = vxor.u32 %v56, 2147483648
    %v105 = vxor.u32 %v57, 2147483648
    %v106 = vxor.u32 %v58, 2147483648
    %v107 = vxor.u32 %v59, 2147483648
    %v108 = vxor.u32 %v60, 2147483648
    %v109 = vxor.u32 %v61, 2147483648
    %v110 = vxor.u32 %v62, 2147483648
    %v111 = vxor.u32 %v63, 2147483648
    %v112 = vxor.u32 %v64, 2147483648
    %v113 = vxor.u32 %v65, 2147483648
    %v114 = vxor.u32 %v66, 2147483648
    %v115 = vxor.u32 %v67, 2147483648
    %v116 = vxor.u32 %v68, 2147483648
    %v117 = vxor.u32 %v69, 2147483648
    %v118 = vxor.u32 %v70, 2147483648
    %v119 = vxor.u32 %v71, 2147483648
    %v120 = vxor.u32 %v72, 2147483648
    %v121 = vmul.f32 %v73, 1.442695
    %v122 = vpow.pop %v121
    %v123 = vmul.f32 %v74, 1.442695
    %v124 = vpow.pop %v123
    %v125 = vmul.f32 %v75, 1.442695
    %v126 = vpow.pop %v125
    %v127 = vmul.f32 %v76, 1.442695
    %v128 = vpow.pop %v127
    %v129 = vmul.f32 %v77, 1.442695
    %v130 = vpow.pop %v129
    %v131 = vmul.f32 %v78, 1.442695
    %v132 = vpow.pop %v131
    %v133 = vmul.f32 %v79, 1.442695
    %v134 = vpow.pop %v133
    %v135 = vmul.f32 %v80, 1.442695
    %v136 = vpow.pop %v135
    %v137 = vmul.f32 %v81, 1.442695
    %v138 = vpow.pop %v137
    %v139 = vmul.f32 %v82, 1.442695
    %v140 = vpow.pop %v139
    %v141 = vmul.f32 %v83, 1.442695
    %v142 = vpow.pop %v141
    %v143 = vmul.f32 %v84, 1.442695
    %v144 = vpow.pop %v143
    %v145 = vmul.f32 %v85, 1.442695
    %v146 = vpow.pop %v145
    %v147 = vmul.f32 %v86, 1.442695
    %v148 = vpow.pop %v147
    %v149 = vmul.f32 %v87, 1.442695
    %v150 = vpow.pop %v149
    %v151 = vmul.f32 %v88, 1.442695
    %v152 = vpow.pop %v151
    %v153 = vmul.f32 %v89, 1.442695
    %v154 = vpow.pop %v153
    %v155 = vmul.f32 %v90, 1.442695
    %v156 = vpow.pop %v155
    %v157 = vmul.f32 %v91, 1.442695
    %v158 = vpow.pop %v157
    %v159 = vmul.f32 %v92, 1.442695
    %v160 = vpow.pop %v159
    %v161 = vmul.f32 %v93, 1.442695
    %v162 = vpow.pop %v161
    %v163 = vmul.f32 %v94, 1.442695
    %v164 = vpow.pop %v163
    %v165 = vmul.f32 %v95, 1.442695
    %v166 = vpow.pop %v165
    %v167 = vmul.f32 %v96, 1.442695
    %v168 = vpow.pop %v167
    %v169 = vmul.f32 %v97, 1.442695
    %v170 = vpow.pop %v169
    %v171 = vmul.f32 %v98, 1.442695
    %v172 = vpow.pop %v171
    %v173 = vmul.f32 %v99, 1.442695
    %v174 = vpow.pop %v173
    %v175 = vmul.f32 %v100, 1.442695
    %v176 = vpow.pop %v175
    %v177 = vmul.f32 %v101, 1.442695
    %v178 = vpow.pop %v177
    %v179 = vmul.f32 %v102, 1.442695
    %v180 = vpow.pop %v179
    %v181 = vmul.f32 %v103, 1.442695
    %v182 = vpow.pop %v181
    %v183 = vmul.f32 %v104, 1.442695
    %v184 = vpow.pop %v183
    %v185 = vmul.f32 %v105, 1.442695
    %v186 = vpow.pop %v185
    %v187 = vmul.f32 %v106, 1.442695
    %v188 = vpow.pop %v187
    %v189 = vmul.f32 %v107, 1.442695
    %v190 = vpow.pop %v189
    %v191 = vmul.f32 %v108, 1.442695
    %v192 = vpow.pop %v191
    %v193 = vmul.f32 %v109, 1.442695
    %v194 = vpow.pop %v193
    %v195 = vmul.f32 %v110, 1.442695
    %v196 = vpow.pop %v195
    %v197 = vmul.f32 %v111, 1.442695
    %v198 = vpow.pop %v197
    %v199 = vmul.f32 %v112, 1.442695
    %v200 = vpow.pop %v199
    %v201 = vmul.f32 %v113, 1.442695
    %v202 = vpow.pop %v201
    %v203 = vmul.f32 %v114, 1.442695
    %v204 = vpow.pop %v203
    %v205 = vmul.f32 %v115, 1.442695
    %v206 = vpow.pop %v205
    %v207 = vmul.f32 %v116, 1.442695
    %v208 = vpow.pop %v207
    %v209 = vmul.f32 %v117, 1.442695
    %v210 = vpow.pop %v209
    %v211 = vmul.f32 %v118, 1.442695
    %v212 = vpow.pop %v211
    %v213 = vmul.f32 %v119, 1.442695
    %v214 = vpow.pop %v213
    %v215 = vmul.f32 %v120, 1.442695
    %v216 = vpow.pop %v215
    %v217 = vadd.f32 %v122, 1.0
    %v218 = vadd.f32 %v124, 1.0
    %v219 = vadd.f32 %v126, 1.0
    %v220 = vadd.f32 %v128, 1.0
    %v221 = vadd.f32 %v130, 1.0
    %v222 = vadd.f32 %v132, 1.0
    %v223 = vadd.f32 %v134, 1.0
    %v224 = vadd.f32 %v136, 1.0
    %v225 = vadd.f32 %v138, 1.0
    %v226 = vadd.f32 %v140, 1.0
    %v227 = vadd.f32 %v142, 1.0
    %v228 = vadd.f32 %v144, 1.0
    %v229 = vadd.f32 %v146, 1.0
    %v230 = vadd.f32 %v148, 1.0
    %v231 = vadd.f32 %v150, 1.0
    %v232 = vadd.f32 %v152, 1.0
    %v233 = vadd.f32 %v154, 1.0
    %v234 = vadd.f32 %v156, 1.0
    %v235 = vadd.f32 %v158, 1.0
    %v236 = vadd.f32 %v160, 1.0
    %v237 = vadd.f32 %v162, 1.0
    %v238 = vadd.f32 %v164, 1.0
    %v239 = vadd.f32 %v166, 1.0
    %v240 = vadd.f32 %v168, 1.0
    %v241 = vadd.f32 %v170, 1.0
    %v242 = vadd.f32 %v172, 1.0
    %v243 = vadd.f32 %v174, 1.0
    %v244 = vadd.f32 %v176, 1.0
    %v245 = vadd.f32 %v178, 1.0
    %v246 = vadd.f32 %v180, 1.0
    %v247 = vadd.f32 %v182, 1.0
    %v248 = vadd.f32 %v184, 1.0
    %v249 = vadd.f32 %v186, 1.0
    %v250 = vadd.f32 %v188, 1.0
    %v251 = vadd.f32 %v190, 1.0
    %v252 = vadd.f32 %v192, 1.0
    %v253 = vadd.f32 %v194, 1.0
    %v254 = vadd.f32 %v196, 1.0
    %v255 = vadd.f32 %v198, 1.0
    %v256 = vadd.f32 %v200, 1.0
    %v257 = vadd.f32 %v202, 1.0
    %v258 = vadd.f32 %v204, 1.0
    %v259 = vadd.f32 %v206, 1.0
    %v260 = vadd.f32 %v208, 1.0
    %v261 = vadd.f32 %v210, 1.0
    %v262 = vadd.f32 %v212, 1.0
    %v263 = vadd.f32 %v214, 1.0
    %v264 = vadd.f32 %v216, 1.0
    %v265 = vrcp.pop %v217
    %v266 = vmul.f32 %v217, %v265
    %v267 = vsub.f32 1.0, %v266
    %v268 = vmul.f32 %v265, %v267
    %v269 = vadd.f32 %v265, %v268
    %vm270 = vweird.f32 %v217
    %vm271 = vweird.f32 %v265
    %vm272 = vmor %vm270, %vm271
    %v273 = vsel %vm272, %v265, %v269
    %v274 = vand.u32 2147483647, %v217
    %vm275 = vcmp.eq.f32.partialorder %v274, 8.507059e+37
    %v276 = vand.u32 %v217, 2147483648
    %v277 = vor.u32 1.1754944e-38, %v276
    %v278 = vsel %vm275, %v277, %v273
    %v279 = vmul.f32 1.0, %v278
    %v280 = vrcp.pop %v218
    %v281 = vmul.f32 %v218, %v280
    %v282 = vsub.f32 1.0, %v281
    %v283 = vmul.f32 %v280, %v282
    %v284 = vadd.f32 %v280, %v283
    %vm285 = vweird.f32 %v218
    %vm286 = vweird.f32 %v280
    %vm287 = vmor %vm285, %vm286
    %v288 = vsel %vm287, %v280, %v284
    %v289 = vand.u32 2147483647, %v218
    %vm290 = vcmp.eq.f32.partialorder %v289, 8.507059e+37
    %v291 = vand.u32 %v218, 2147483648
    %v292 = vor.u32 1.1754944e-38, %v291
    %v293 = vsel %vm290, %v292, %v288
    %v294 = vmul.f32 1.0, %v293
    %v295 = vrcp.pop %v219
    %v296 = vmul.f32 %v219, %v295
    %v297 = vsub.f32 1.0, %v296
    %v298 = vmul.f32 %v295, %v297
    %v299 = vadd.f32 %v295, %v298
    %vm300 = vweird.f32 %v219
    %vm301 = vweird.f32 %v295
    %vm302 = vmor %vm300, %vm301
    %v303 = vsel %vm302, %v295, %v299
    %v304 = vand.u32 2147483647, %v219
    %vm305 = vcmp.eq.f32.partialorder %v304, 8.507059e+37
    %v306 = vand.u32 %v219, 2147483648
    %v307 = vor.u32 1.1754944e-38, %v306
    %v308 = vsel %vm305, %v307, %v303
    %v309 = vmul.f32 1.0, %v308
    %v310 = vrcp.pop %v220
    %v311 = vmul.f32 %v220, %v310
    %v312 = vsub.f32 1.0, %v311
    %v313 = vmul.f32 %v310, %v312
    %v314 = vadd.f32 %v310, %v313
    %vm315 = vweird.f32 %v220
    %vm316 = vweird.f32 %v310
    %vm317 = vmor %vm315, %vm316
    %v318 = vsel %vm317, %v310, %v314
    %v319 = vand.u32 2147483647, %v220
    %vm320 = vcmp.eq.f32.partialorder %v319, 8.507059e+37
    %v321 = vand.u32 %v220, 2147483648
    %v322 = vor.u32 1.1754944e-38, %v321
    %v323 = vsel %vm320, %v322, %v318
    %v324 = vmul.f32 1.0, %v323
    %v325 = vrcp.pop %v221
    %v326 = vmul.f32 %v221, %v325
    %v327 = vsub.f32 1.0, %v326
    %v328 = vmul.f32 %v325, %v327
    %v329 = vadd.f32 %v325, %v328
    %vm330 = vweird.f32 %v221
    %vm331 = vweird.f32 %v325
    %vm332 = vmor %vm330, %vm331
    %v333 = vsel %vm332, %v325, %v329
    %v334 = vand.u32 2147483647, %v221
    %vm335 = vcmp.eq.f32.partialorder %v334, 8.507059e+37
    %v336 = vand.u32 %v221, 2147483648
    %v337 = vor.u32 1.1754944e-38, %v336
    %v338 = vsel %vm335, %v337, %v333
    %v339 = vmul.f32 1.0, %v338
    %v340 = vrcp.pop %v222
    %v341 = vmul.f32 %v222, %v340
    %v342 = vsub.f32 1.0, %v341
    %v343 = vmul.f32 %v340, %v342
    %v344 = vadd.f32 %v340, %v343
    %vm345 = vweird.f32 %v222
    %vm346 = vweird.f32 %v340
    %vm347 = vmor %vm345, %vm346
    %v348 = vsel %vm347, %v340, %v344
    %v349 = vand.u32 2147483647, %v222
    %vm350 = vcmp.eq.f32.partialorder %v349, 8.507059e+37
    %v351 = vand.u32 %v222, 2147483648
    %v352 = vor.u32 1.1754944e-38, %v351
    %v353 = vsel %vm350, %v352, %v348
    %v354 = vmul.f32 1.0, %v353
    %v355 = vrcp.pop %v223
    %v356 = vmul.f32 %v223, %v355
    %v357 = vsub.f32 1.0, %v356
    %v358 = vmul.f32 %v355, %v357
    %v359 = vadd.f32 %v355, %v358
    %vm360 = vweird.f32 %v223
    %vm361 = vweird.f32 %v355
    %vm362 = vmor %vm360, %vm361
    %v363 = vsel %vm362, %v355, %v359
    %v364 = vand.u32 2147483647, %v223
    %vm365 = vcmp.eq.f32.partialorder %v364, 8.507059e+37
    %v366 = vand.u32 %v223, 2147483648
    %v367 = vor.u32 1.1754944e-38, %v366
    %v368 = vsel %vm365, %v367, %v363
    %v369 = vmul.f32 1.0, %v368
    %v370 = vrcp.pop %v224
    %v371 = vmul.f32 %v224, %v370
    %v372 = vsub.f32 1.0, %v371
    %v373 = vmul.f32 %v370, %v372
    %v374 = vadd.f32 %v370, %v373
    %vm375 = vweird.f32 %v224
    %vm376 = vweird.f32 %v370
    %vm377 = vmor %vm375, %vm376
    %v378 = vsel %vm377, %v370, %v374
    %v379 = vand.u32 2147483647, %v224
    %vm380 = vcmp.eq.f32.partialorder %v379, 8.507059e+37
    %v381 = vand.u32 %v224, 2147483648
    %v382 = vor.u32 1.1754944e-38, %v381
    %v383 = vsel %vm380, %v382, %v378
    %v384 = vmul.f32 1.0, %v383
    %v385 = vrcp.pop %v225
    %v386 = vmul.f32 %v225, %v385
    %v387 = vsub.f32 1.0, %v386
    %v388 = vmul.f32 %v385, %v387
    %v389 = vadd.f32 %v385, %v388
    %vm390 = vweird.f32 %v225
    %vm391 = vweird.f32 %v385
    %vm392 = vmor %vm390, %vm391
    %v393 = vsel %vm392, %v385, %v389
    %v394 = vand.u32 2147483647, %v225
    %vm395 = vcmp.eq.f32.partialorder %v394, 8.507059e+37
    %v396 = vand.u32 %v225, 2147483648
    %v397 = vor.u32 1.1754944e-38, %v396
    %v398 = vsel %vm395, %v397, %v393
    %v399 = vmul.f32 1.0, %v398
    %v400 = vrcp.pop %v226
    %v401 = vmul.f32 %v226, %v400
    %v402 = vsub.f32 1.0, %v401
    %v403 = vmul.f32 %v400, %v402
    %v404 = vadd.f32 %v400, %v403
    %vm405 = vweird.f32 %v226
    %vm406 = vweird.f32 %v400
    %vm407 = vmor %vm405, %vm406
    %v408 = vsel %vm407, %v400, %v404
    %v409 = vand.u32 2147483647, %v226
    %vm410 = vcmp.eq.f32.partialorder %v409, 8.507059e+37
    %v411 = vand.u32 %v226, 2147483648
    %v412 = vor.u32 1.1754944e-38, %v411
    %v413 = vsel %vm410, %v412, %v408
    %v414 = vmul.f32 1.0, %v413
    %v415 = vrcp.pop %v227
    %v416 = vmul.f32 %v227, %v415
    %v417 = vsub.f32 1.0, %v416
    %v418 = vmul.f32 %v415, %v417
    %v419 = vadd.f32 %v415, %v418
    %vm420 = vweird.f32 %v227
    %vm421 = vweird.f32 %v415
    %vm422 = vmor %vm420, %vm421
    %v423 = vsel %vm422, %v415, %v419
    %v424 = vand.u32 2147483647, %v227
    %vm425 = vcmp.eq.f32.partialorder %v424, 8.507059e+37
    %v426 = vand.u32 %v227, 2147483648
    %v427 = vor.u32 1.1754944e-38, %v426
    %v428 = vsel %vm425, %v427, %v423
    %v429 = vmul.f32 1.0, %v428
    %v430 = vrcp.pop %v228
    %v431 = vmul.f32 %v228, %v430
    %v432 = vsub.f32 1.0, %v431
    %v433 = vmul.f32 %v430, %v432
    %v434 = vadd.f32 %v430, %v433
    %vm435 = vweird.f32 %v228
    %vm436 = vweird.f32 %v430
    %vm437 = vmor %vm435, %vm436
    %v438 = vsel %vm437, %v430, %v434
    %v439 = vand.u32 2147483647, %v228
    %vm440 = vcmp.eq.f32.partialorder %v439, 8.507059e+37
    %v441 = vand.u32 %v228, 2147483648
    %v442 = vor.u32 1.1754944e-38, %v441
    %v443 = vsel %vm440, %v442, %v438
    %v444 = vmul.f32 1.0, %v443
    %v445 = vrcp.pop %v229
    %v446 = vmul.f32 %v229, %v445
    %v447 = vsub.f32 1.0, %v446
    %v448 = vmul.f32 %v445, %v447
    %v449 = vadd.f32 %v445, %v448
    %vm450 = vweird.f32 %v229
    %vm451 = vweird.f32 %v445
    %vm452 = vmor %vm450, %vm451
    %v453 = vsel %vm452, %v445, %v449
    %v454 = vand.u32 2147483647, %v229
    %vm455 = vcmp.eq.f32.partialorder %v454, 8.507059e+37
    %v456 = vand.u32 %v229, 2147483648
    %v457 = vor.u32 1.1754944e-38, %v456
    %v458 = vsel %vm455, %v457, %v453
    %v459 = vmul.f32 1.0, %v458
    %v460 = vrcp.pop %v230
    %v461 = vmul.f32 %v230, %v460
    %v462 = vsub.f32 1.0, %v461
    %v463 = vmul.f32 %v460, %v462
    %v464 = vadd.f32 %v460, %v463
    %vm465 = vweird.f32 %v230
    %vm466 = vweird.f32 %v460
    %vm467 = vmor %vm465, %vm466
    %v468 = vsel %vm467, %v460, %v464
    %v469 = vand.u32 2147483647, %v230
    %vm470 = vcmp.eq.f32.partialorder %v469, 8.507059e+37
    %v471 = vand.u32 %v230, 2147483648
    %v472 = vor.u32 1.1754944e-38, %v471
    %v473 = vsel %vm470, %v472, %v468
    %v474 = vmul.f32 1.0, %v473
    %v475 = vrcp.pop %v231
    %v476 = vmul.f32 %v231, %v475
    %v477 = vsub.f32 1.0, %v476
    %v478 = vmul.f32 %v475, %v477
    %v479 = vadd.f32 %v475, %v478
    %vm480 = vweird.f32 %v231
    %vm481 = vweird.f32 %v475
    %vm482 = vmor %vm480, %vm481
    %v483 = vsel %vm482, %v475, %v479
    %v484 = vand.u32 2147483647, %v231
    %vm485 = vcmp.eq.f32.partialorder %v484, 8.507059e+37
    %v486 = vand.u32 %v231, 2147483648
    %v487 = vor.u32 1.1754944e-38, %v486
    %v488 = vsel %vm485, %v487, %v483
    %v489 = vmul.f32 1.0, %v488
    %v490 = vrcp.pop %v232
    %v491 = vmul.f32 %v232, %v490
    %v492 = vsub.f32 1.0, %v491
    %v493 = vmul.f32 %v490, %v492
    %v494 = vadd.f32 %v490, %v493
    %vm495 = vweird.f32 %v232
    %vm496 = vweird.f32 %v490
    %vm497 = vmor %vm495, %vm496
    %v498 = vsel %vm497, %v490, %v494
    %v499 = vand.u32 2147483647, %v232
    %vm500 = vcmp.eq.f32.partialorder %v499, 8.507059e+37
    %v501 = vand.u32 %v232, 2147483648
    %v502 = vor.u32 1.1754944e-38, %v501
    %v503 = vsel %vm500, %v502, %v498
    %v504 = vmul.f32 1.0, %v503
    %v505 = vrcp.pop %v233
    %v506 = vmul.f32 %v233, %v505
    %v507 = vsub.f32 1.0, %v506
    %v508 = vmul.f32 %v505, %v507
    %v509 = vadd.f32 %v505, %v508
    %vm510 = vweird.f32 %v233
    %vm511 = vweird.f32 %v505
    %vm512 = vmor %vm510, %vm511
    %v513 = vsel %vm512, %v505, %v509
    %v514 = vand.u32 2147483647, %v233
    %vm515 = vcmp.eq.f32.partialorder %v514, 8.507059e+37
    %v516 = vand.u32 %v233, 2147483648
    %v517 = vor.u32 1.1754944e-38, %v516
    %v518 = vsel %vm515, %v517, %v513
    %v519 = vmul.f32 1.0, %v518
    %v520 = vrcp.pop %v234
    %v521 = vmul.f32 %v234, %v520
    %v522 = vsub.f32 1.0, %v521
    %v523 = vmul.f32 %v520, %v522
    %v524 = vadd.f32 %v520, %v523
    %vm525 = vweird.f32 %v234
    %vm526 = vweird.f32 %v520
    %vm527 = vmor %vm525, %vm526
    %v528 = vsel %vm527, %v520, %v524
    %v529 = vand.u32 2147483647, %v234
    %vm530 = vcmp.eq.f32.partialorder %v529, 8.507059e+37
    %v531 = vand.u32 %v234, 2147483648
    %v532 = vor.u32 1.1754944e-38, %v531
    %v533 = vsel %vm530, %v532, %v528
    %v534 = vmul.f32 1.0, %v533
    %v535 = vrcp.pop %v235
    %v536 = vmul.f32 %v235, %v535
    %v537 = vsub.f32 1.0, %v536
    %v538 = vmul.f32 %v535, %v537
    %v539 = vadd.f32 %v535, %v538
    %vm540 = vweird.f32 %v235
    %vm541 = vweird.f32 %v535
    %vm542 = vmor %vm540, %vm541
    %v543 = vsel %vm542, %v535, %v539
    %v544 = vand.u32 2147483647, %v235
    %vm545 = vcmp.eq.f32.partialorder %v544, 8.507059e+37
    %v546 = vand.u32 %v235, 2147483648
    %v547 = vor.u32 1.1754944e-38, %v546
    %v548 = vsel %vm545, %v547, %v543
    %v549 = vmul.f32 1.0, %v548
    %v550 = vrcp.pop %v236
    %v551 = vmul.f32 %v236, %v550
    %v552 = vsub.f32 1.0, %v551
    %v553 = vmul.f32 %v550, %v552
    %v554 = vadd.f32 %v550, %v553
    %vm555 = vweird.f32 %v236
    %vm556 = vweird.f32 %v550
    %vm557 = vmor %vm555, %vm556
    %v558 = vsel %vm557, %v550, %v554
    %v559 = vand.u32 2147483647, %v236
    %vm560 = vcmp.eq.f32.partialorder %v559, 8.507059e+37
    %v561 = vand.u32 %v236, 2147483648
    %v562 = vor.u32 1.1754944e-38, %v561
    %v563 = vsel %vm560, %v562, %v558
    %v564 = vmul.f32 1.0, %v563
    %v565 = vrcp.pop %v237
    %v566 = vmul.f32 %v237, %v565
    %v567 = vsub.f32 1.0, %v566
    %v568 = vmul.f32 %v565, %v567
    %v569 = vadd.f32 %v565, %v568
    %vm570 = vweird.f32 %v237
    %vm571 = vweird.f32 %v565
    %vm572 = vmor %vm570, %vm571
    %v573 = vsel %vm572, %v565, %v569
    %v574 = vand.u32 2147483647, %v237
    %vm575 = vcmp.eq.f32.partialorder %v574, 8.507059e+37
    %v576 = vand.u32 %v237, 2147483648
    %v577 = vor.u32 1.1754944e-38, %v576
    %v578 = vsel %vm575, %v577, %v573
    %v579 = vmul.f32 1.0, %v578
    %v580 = vrcp.pop %v238
    %v581 = vmul.f32 %v238, %v580
    %v582 = vsub.f32 1.0, %v581
    %v583 = vmul.f32 %v580, %v582
    %v584 = vadd.f32 %v580, %v583
    %vm585 = vweird.f32 %v238
    %vm586 = vweird.f32 %v580
    %vm587 = vmor %vm585, %vm586
    %v588 = vsel %vm587, %v580, %v584
    %v589 = vand.u32 2147483647, %v238
    %vm590 = vcmp.eq.f32.partialorder %v589, 8.507059e+37
    %v591 = vand.u32 %v238, 2147483648
    %v592 = vor.u32 1.1754944e-38, %v591
    %v593 = vsel %vm590, %v592, %v588
    %v594 = vmul.f32 1.0, %v593
    %v595 = vrcp.pop %v239
    %v596 = vmul.f32 %v239, %v595
    %v597 = vsub.f32 1.0, %v596
    %v598 = vmul.f32 %v595, %v597
    %v599 = vadd.f32 %v595, %v598
    %vm600 = vweird.f32 %v239
    %vm601 = vweird.f32 %v595
    %vm602 = vmor %vm600, %vm601
    %v603 = vsel %vm602, %v595, %v599
    %v604 = vand.u32 2147483647, %v239
    %vm605 = vcmp.eq.f32.partialorder %v604, 8.507059e+37
    %v606 = vand.u32 %v239, 2147483648
    %v607 = vor.u32 1.1754944e-38, %v606
    %v608 = vsel %vm605, %v607, %v603
    %v609 = vmul.f32 1.0, %v608
    %v610 = vrcp.pop %v240
    %v611 = vmul.f32 %v240, %v610
    %v612 = vsub.f32 1.0, %v611
    %v613 = vmul.f32 %v610, %v612
    %v614 = vadd.f32 %v610, %v613
    %vm615 = vweird.f32 %v240
    %vm616 = vweird.f32 %v610
    %vm617 = vmor %vm615, %vm616
    %v618 = vsel %vm617, %v610, %v614
    %v619 = vand.u32 2147483647, %v240
    %vm620 = vcmp.eq.f32.partialorder %v619, 8.507059e+37
    %v621 = vand.u32 %v240, 2147483648
    %v622 = vor.u32 1.1754944e-38, %v621
    %v623 = vsel %vm620, %v622, %v618
    %v624 = vmul.f32 1.0, %v623
    %v625 = vrcp.pop %v241
    %v626 = vmul.f32 %v241, %v625
    %v627 = vsub.f32 1.0, %v626
    %v628 = vmul.f32 %v625, %v627
    %v629 = vadd.f32 %v625, %v628
    %vm630 = vweird.f32 %v241
    %vm631 = vweird.f32 %v625
    %vm632 = vmor %vm630, %vm631
    %v633 = vsel %vm632, %v625, %v629
    %v634 = vand.u32 2147483647, %v241
    %vm635 = vcmp.eq.f32.partialorder %v634, 8.507059e+37
    %v636 = vand.u32 %v241, 2147483648
    %v637 = vor.u32 1.1754944e-38, %v636
    %v638 = vsel %vm635, %v637, %v633
    %v639 = vmul.f32 1.0, %v638
    %v640 = vrcp.pop %v242
    %v641 = vmul.f32 %v242, %v640
    %v642 = vsub.f32 1.0, %v641
    %v643 = vmul.f32 %v640, %v642
    %v644 = vadd.f32 %v640, %v643
    %vm645 = vweird.f32 %v242
    %vm646 = vweird.f32 %v640
    %vm647 = vmor %vm645, %vm646
    %v648 = vsel %vm647, %v640, %v644
    %v649 = vand.u32 2147483647, %v242
    %vm650 = vcmp.eq.f32.partialorder %v649, 8.507059e+37
    %v651 = vand.u32 %v242, 2147483648
    %v652 = vor.u32 1.1754944e-38, %v651
    %v653 = vsel %vm650, %v652, %v648
    %v654 = vmul.f32 1.0, %v653
    %v655 = vrcp.pop %v243
    %v656 = vmul.f32 %v243, %v655
    %v657 = vsub.f32 1.0, %v656
    %v658 = vmul.f32 %v655, %v657
    %v659 = vadd.f32 %v655, %v658
    %vm660 = vweird.f32 %v243
    %vm661 = vweird.f32 %v655
    %vm662 = vmor %vm660, %vm661
    %v663 = vsel %vm662, %v655, %v659
    %v664 = vand.u32 2147483647, %v243
    %vm665 = vcmp.eq.f32.partialorder %v664, 8.507059e+37
    %v666 = vand.u32 %v243, 2147483648
    %v667 = vor.u32 1.1754944e-38, %v666
    %v668 = vsel %vm665, %v667, %v663
    %v669 = vmul.f32 1.0, %v668
    %v670 = vrcp.pop %v244
    %v671 = vmul.f32 %v244, %v670
    %v672 = vsub.f32 1.0, %v671
    %v673 = vmul.f32 %v670, %v672
    %v674 = vadd.f32 %v670, %v673
    %vm675 = vweird.f32 %v244
    %vm676 = vweird.f32 %v670
    %vm677 = vmor %vm675, %vm676
    %v678 = vsel %vm677, %v670, %v674
    %v679 = vand.u32 2147483647, %v244
    %vm680 = vcmp.eq.f32.partialorder %v679, 8.507059e+37
    %v681 = vand.u32 %v244, 2147483648
    %v682 = vor.u32 1.1754944e-38, %v681
    %v683 = vsel %vm680, %v682, %v678
    %v684 = vmul.f32 1.0, %v683
    %v685 = vrcp.pop %v245
    %v686 = vmul.f32 %v245, %v685
    %v687 = vsub.f32 1.0, %v686
    %v688 = vmul.f32 %v685, %v687
    %v689 = vadd.f32 %v685, %v688
    %vm690 = vweird.f32 %v245
    %vm691 = vweird.f32 %v685
    %vm692 = vmor %vm690, %vm691
    %v693 = vsel %vm692, %v685, %v689
    %v694 = vand.u32 2147483647, %v245
    %vm695 = vcmp.eq.f32.partialorder %v694, 8.507059e+37
    %v696 = vand.u32 %v245, 2147483648
    %v697 = vor.u32 1.1754944e-38, %v696
    %v698 = vsel %vm695, %v697, %v693
    %v699 = vmul.f32 1.0, %v698
    %v700 = vrcp.pop %v246
    %v701 = vmul.f32 %v246, %v700
    %v702 = vsub.f32 1.0, %v701
    %v703 = vmul.f32 %v700, %v702
    %v704 = vadd.f32 %v700, %v703
    %vm705 = vweird.f32 %v246
    %vm706 = vweird.f32 %v700
    %vm707 = vmor %vm705, %vm706
    %v708 = vsel %vm707, %v700, %v704
    %v709 = vand.u32 2147483647, %v246
    %vm710 = vcmp.eq.f32.partialorder %v709, 8.507059e+37
    %v711 = vand.u32 %v246, 2147483648
    %v712 = vor.u32 1.1754944e-38, %v711
    %v713 = vsel %vm710, %v712, %v708
    %v714 = vmul.f32 1.0, %v713
    %v715 = vrcp.pop %v247
    %v716 = vmul.f32 %v247, %v715
    %v717 = vsub.f32 1.0, %v716
    %v718 = vmul.f32 %v715, %v717
    %v719 = vadd.f32 %v715, %v718
    %vm720 = vweird.f32 %v247
    %vm721 = vweird.f32 %v715
    %vm722 = vmor %vm720, %vm721
    %v723 = vsel %vm722, %v715, %v719
    %v724 = vand.u32 2147483647, %v247
    %vm725 = vcmp.eq.f32.partialorder %v724, 8.507059e+37
    %v726 = vand.u32 %v247, 2147483648
    %v727 = vor.u32 1.1754944e-38, %v726
    %v728 = vsel %vm725, %v727, %v723
    %v729 = vmul.f32 1.0, %v728
    %v730 = vrcp.pop %v248
    %v731 = vmul.f32 %v248, %v730
    %v732 = vsub.f32 1.0, %v731
    %v733 = vmul.f32 %v730, %v732
    %v734 = vadd.f32 %v730, %v733
    %vm735 = vweird.f32 %v248
    %vm736 = vweird.f32 %v730
    %vm737 = vmor %vm735, %vm736
    %v738 = vsel %vm737, %v730, %v734
    %v739 = vand.u32 2147483647, %v248
    %vm740 = vcmp.eq.f32.partialorder %v739, 8.507059e+37
    %v741 = vand.u32 %v248, 2147483648
    %v742 = vor.u32 1.1754944e-38, %v741
    %v743 = vsel %vm740, %v742, %v738
    %v744 = vmul.f32 1.0, %v743
    %v745 = vrcp.pop %v249
    %v746 = vmul.f32 %v249, %v745
    %v747 = vsub.f32 1.0, %v746
    %v748 = vmul.f32 %v745, %v747
    %v749 = vadd.f32 %v745, %v748
    %vm750 = vweird.f32 %v249
    %vm751 = vweird.f32 %v745
    %vm752 = vmor %vm750, %vm751
    %v753 = vsel %vm752, %v745, %v749
    %v754 = vand.u32 2147483647, %v249
    %vm755 = vcmp.eq.f32.partialorder %v754, 8.507059e+37
    %v756 = vand.u32 %v249, 2147483648
    %v757 = vor.u32 1.1754944e-38, %v756
    %v758 = vsel %vm755, %v757, %v753
    %v759 = vmul.f32 1.0, %v758
    %v760 = vrcp.pop %v250
    %v761 = vmul.f32 %v250, %v760
    %v762 = vsub.f32 1.0, %v761
    %v763 = vmul.f32 %v760, %v762
    %v764 = vadd.f32 %v760, %v763
    %vm765 = vweird.f32 %v250
    %vm766 = vweird.f32 %v760
    %vm767 = vmor %vm765, %vm766
    %v768 = vsel %vm767, %v760, %v764
    %v769 = vand.u32 2147483647, %v250
    %vm770 = vcmp.eq.f32.partialorder %v769, 8.507059e+37
    %v771 = vand.u32 %v250, 2147483648
    %v772 = vor.u32 1.1754944e-38, %v771
    %v773 = vsel %vm770, %v772, %v768
    %v774 = vmul.f32 1.0, %v773
    %v775 = vrcp.pop %v251
    %v776 = vmul.f32 %v251, %v775
    %v777 = vsub.f32 1.0, %v776
    %v778 = vmul.f32 %v775, %v777
    %v779 = vadd.f32 %v775, %v778
    %vm780 = vweird.f32 %v251
    %vm781 = vweird.f32 %v775
    %vm782 = vmor %vm780, %vm781
    %v783 = vsel %vm782, %v775, %v779
    %v784 = vand.u32 2147483647, %v251
    %vm785 = vcmp.eq.f32.partialorder %v784, 8.507059e+37
    %v786 = vand.u32 %v251, 2147483648
    %v787 = vor.u32 1.1754944e-38, %v786
    %v788 = vsel %vm785, %v787, %v783
    %v789 = vmul.f32 1.0, %v788
    %v790 = vrcp.pop %v252
    %v791 = vmul.f32 %v252, %v790
    %v792 = vsub.f32 1.0, %v791
    %v793 = vmul.f32 %v790, %v792
    %v794 = vadd.f32 %v790, %v793
    %vm795 = vweird.f32 %v252
    %vm796 = vweird.f32 %v790
    %vm797 = vmor %vm795, %vm796
    %v798 = vsel %vm797, %v790, %v794
    %v799 = vand.u32 2147483647, %v252
    %vm800 = vcmp.eq.f32.partialorder %v799, 8.507059e+37
    %v801 = vand.u32 %v252, 2147483648
    %v802 = vor.u32 1.1754944e-38, %v801
    %v803 = vsel %vm800, %v802, %v798
    %v804 = vmul.f32 1.0, %v803
    %v805 = vrcp.pop %v253
    %v806 = vmul.f32 %v253, %v805
    %v807 = vsub.f32 1.0, %v806
    %v808 = vmul.f32 %v805, %v807
    %v809 = vadd.f32 %v805, %v808
    %vm810 = vweird.f32 %v253
    %vm811 = vweird.f32 %v805
    %vm812 = vmor %vm810, %vm811
    %v813 = vsel %vm812, %v805, %v809
    %v814 = vand.u32 2147483647, %v253
    %vm815 = vcmp.eq.f32.partialorder %v814, 8.507059e+37
    %v816 = vand.u32 %v253, 2147483648
    %v817 = vor.u32 1.1754944e-38, %v816
    %v818 = vsel %vm815, %v817, %v813
    %v819 = vmul.f32 1.0, %v818
    %v820 = vrcp.pop %v254
    %v821 = vmul.f32 %v254, %v820
    %v822 = vsub.f32 1.0, %v821
    %v823 = vmul.f32 %v820, %v822
    %v824 = vadd.f32 %v820, %v823
    %vm825 = vweird.f32 %v254
    %vm826 = vweird.f32 %v820
    %vm827 = vmor %vm825, %vm826
    %v828 = vsel %vm827, %v820, %v824
    %v829 = vand.u32 2147483647, %v254
    %vm830 = vcmp.eq.f32.partialorder %v829, 8.507059e+37
    %v831 = vand.u32 %v254, 2147483648
    %v832 = vor.u32 1.1754944e-38, %v831
    %v833 = vsel %vm830, %v832, %v828
    %v834 = vmul.f32 1.0, %v833
    %v835 = vrcp.pop %v255
    %v836 = vmul.f32 %v255, %v835
    %v837 = vsub.f32 1.0, %v836
    %v838 = vmul.f32 %v835, %v837
    %v839 = vadd.f32 %v835, %v838
    %vm840 = vweird.f32 %v255
    %vm841 = vweird.f32 %v835
    %vm842 = vmor %vm840, %vm841
    %v843 = vsel %vm842, %v835, %v839
    %v844 = vand.u32 2147483647, %v255
    %vm845 = vcmp.eq.f32.partialorder %v844, 8.507059e+37
    %v846 = vand.u32 %v255, 2147483648
    %v847 = vor.u32 1.1754944e-38, %v846
    %v848 = vsel %vm845, %v847, %v843
    %v849 = vmul.f32 1.0, %v848
    %v850 = vrcp.pop %v256
    %v851 = vmul.f32 %v256, %v850
    %v852 = vsub.f32 1.0, %v851
    %v853 = vmul.f32 %v850, %v852
    %v854 = vadd.f32 %v850, %v853
    %vm855 = vweird.f32 %v256
    %vm856 = vweird.f32 %v850
    %vm857 = vmor %vm855, %vm856
    %v858 = vsel %vm857, %v850, %v854
    %v859 = vand.u32 2147483647, %v256
    %vm860 = vcmp.eq.f32.partialorder %v859, 8.507059e+37
    %v861 = vand.u32 %v256, 2147483648
    %v862 = vor.u32 1.1754944e-38, %v861
    %v863 = vsel %vm860, %v862, %v858
    %v864 = vmul.f32 1.0, %v863
    %v865 = vrcp.pop %v257
    %v866 = vmul.f32 %v257, %v865
    %v867 = vsub.f32 1.0, %v866
    %v868 = vmul.f32 %v865, %v867
    %v869 = vadd.f32 %v865, %v868
    %vm870 = vweird.f32 %v257
    %vm871 = vweird.f32 %v865
    %vm872 = vmor %vm870, %vm871
    %v873 = vsel %vm872, %v865, %v869
    %v874 = vand.u32 2147483647, %v257
    %vm875 = vcmp.eq.f32.partialorder %v874, 8.507059e+37
    %v876 = vand.u32 %v257, 2147483648
    %v877 = vor.u32 1.1754944e-38, %v876
    %v878 = vsel %vm875, %v877, %v873
    %v879 = vmul.f32 1.0, %v878
    %v880 = vrcp.pop %v258
    %v881 = vmul.f32 %v258, %v880
    %v882 = vsub.f32 1.0, %v881
    %v883 = vmul.f32 %v880, %v882
    %v884 = vadd.f32 %v880, %v883
    %vm885 = vweird.f32 %v258
    %vm886 = vweird.f32 %v880
    %vm887 = vmor %vm885, %vm886
    %v888 = vsel %vm887, %v880, %v884
    %v889 = vand.u32 2147483647, %v258
    %vm890 = vcmp.eq.f32.partialorder %v889, 8.507059e+37
    %v891 = vand.u32 %v258, 2147483648
    %v892 = vor.u32 1.1754944e-38, %v891
    %v893 = vsel %vm890, %v892, %v888
    %v894 = vmul.f32 1.0, %v893
    %v895 = vrcp.pop %v259
    %v896 = vmul.f32 %v259, %v895
    %v897 = vsub.f32 1.0, %v896
    %v898 = vmul.f32 %v895, %v897
    %v899 = vadd.f32 %v895, %v898
    %vm900 = vweird.f32 %v259
    %vm901 = vweird.f32 %v895
    %vm902 = vmor %vm900, %vm901
    %v903 = vsel %vm902, %v895, %v899
    %v904 = vand.u32 2147483647, %v259
    %vm905 = vcmp.eq.f32.partialorder %v904, 8.507059e+37
    %v906 = vand.u32 %v259, 2147483648
    %v907 = vor.u32 1.1754944e-38, %v906
    %v908 = vsel %vm905, %v907, %v903
    %v909 = vmul.f32 1.0, %v908
    %v910 = vrcp.pop %v260
    %v911 = vmul.f32 %v260, %v910
    %v912 = vsub.f32 1.0, %v911
    %v913 = vmul.f32 %v910, %v912
    %v914 = vadd.f32 %v910, %v913
    %vm915 = vweird.f32 %v260
    %vm916 = vweird.f32 %v910
    %vm917 = vmor %vm915, %vm916
    %v918 = vsel %vm917, %v910, %v914
    %v919 = vand.u32 2147483647, %v260
    %vm920 = vcmp.eq.f32.partialorder %v919, 8.507059e+37
    %v921 = vand.u32 %v260, 2147483648
    %v922 = vor.u32 1.1754944e-38, %v921
    %v923 = vsel %vm920, %v922, %v918
    %v924 = vmul.f32 1.0, %v923
    %v925 = vrcp.pop %v261
    %v926 = vmul.f32 %v261, %v925
    %v927 = vsub.f32 1.0, %v926
    %v928 = vmul.f32 %v925, %v927
    %v929 = vadd.f32 %v925, %v928
    %vm930 = vweird.f32 %v261
    %vm931 = vweird.f32 %v925
    %vm932 = vmor %vm930, %vm931
    %v933 = vsel %vm932, %v925, %v929
    %v934 = vand.u32 2147483647, %v261
    %vm935 = vcmp.eq.f32.partialorder %v934, 8.507059e+37
    %v936 = vand.u32 %v261, 2147483648
    %v937 = vor.u32 1.1754944e-38, %v936
    %v938 = vsel %vm935, %v937, %v933
    %v939 = vmul.f32 1.0, %v938
    %v940 = vrcp.pop %v262
    %v941 = vmul.f32 %v262, %v940
    %v942 = vsub.f32 1.0, %v941
    %v943 = vmul.f32 %v940, %v942
    %v944 = vadd.f32 %v940, %v943
    %vm945 = vweird.f32 %v262
    %vm946 = vweird.f32 %v940
    %vm947 = vmor %vm945, %vm946
    %v948 = vsel %vm947, %v940, %v944
    %v949 = vand.u32 2147483647, %v262
    %vm950 = vcmp.eq.f32.partialorder %v949, 8.507059e+37
    %v951 = vand.u32 %v262, 2147483648
    %v952 = vor.u32 1.1754944e-38, %v951
    %v953 = vsel %vm950, %v952, %v948
    %v954 = vmul.f32 1.0, %v953
    %v955 = vrcp.pop %v263
    %v956 = vmul.f32 %v263, %v955
    %v957 = vsub.f32 1.0, %v956
    %v958 = vmul.f32 %v955, %v957
    %v959 = vadd.f32 %v955, %v958
    %vm960 = vweird.f32 %v263
    %vm961 = vweird.f32 %v955
    %vm962 = vmor %vm960, %vm961
    %v963 = vsel %vm962, %v955, %v959
    %v964 = vand.u32 2147483647, %v263
    %vm965 = vcmp.eq.f32.partialorder %v964, 8.507059e+37
    %v966 = vand.u32 %v263, 2147483648
    %v967 = vor.u32 1.1754944e-38, %v966
    %v968 = vsel %vm965, %v967, %v963
    %v969 = vmul.f32 1.0, %v968
    %v970 = vrcp.pop %v264
    %v971 = vmul.f32 %v264, %v970
    %v972 = vsub.f32 1.0, %v971
    %v973 = vmul.f32 %v970, %v972
    %v974 = vadd.f32 %v970, %v973
    %vm975 = vweird.f32 %v264
    %vm976 = vweird.f32 %v970
    %vm977 = vmor %vm975, %vm976
    %v978 = vsel %vm977, %v970, %v974
    %v979 = vand.u32 2147483647, %v264
    %vm980 = vcmp.eq.f32.partialorder %v979, 8.507059e+37
    %v981 = vand.u32 %v264, 2147483648
    %v982 = vor.u32 1.1754944e-38, %v981
    %v983 = vsel %vm980, %v982, %v978
    %v984 = vmul.f32 1.0, %v983
    %v985 = vlaneseq
    %v986 = vshrl.u32 %v985, 7
    %v987 = vadd.s32 %v986, 8
    %v988 = vadd.s32 %v986, 16
    %v989 = vadd.s32 %v986, 24
    %v990 = vadd.s32 %v986, 32
    %v991 = vadd.s32 %v986, 40
    %v992 = vadd.s32 %v986, 48
    %v993 = vadd.s32 %v986, 56
    %v994 = vadd.s32 %v986, 64
    %v995 = vadd.s32 %v986, 72
    %v996 = vadd.s32 %v986, 80
    %v997 = vadd.s32 %v986, 88
    %v998 = vadd.s32 %v986, 96
    %v999 = vadd.s32 %v986, 104
    %v1000 = vadd.s32 %v986, 112
    %v1001 = vadd.s32 %v986, 120
    %v1002 = vadd.s32 %v986, 128
    %v1003 = vadd.s32 %v986, 136
    %v1004 = vadd.s32 %v986, 144
    %v1005 = vadd.s32 %v986, 152
    %v1006 = vadd.s32 %v986, 160
    %v1007 = vadd.s32 %v986, 168
    %v1008 = vadd.s32 %v986, 176
    %v1009 = vadd.s32 %v986, 184
    %v1010 = vadd.s32 %v986, 192
    %v1011 = vadd.s32 %v986, 200
    %v1012 = vadd.s32 %v986, 208
    %v1013 = vadd.s32 %v986, 216
    %v1014 = vadd.s32 %v986, 224
    %v1015 = vadd.s32 %v986, 232
    %v1016 = vadd.s32 %v986, 240
    %v1017 = vadd.s32 %v986, 248
    %v1018 = vadd.s32 %v986, 256
    %v1019 = vadd.s32 %v986, 264
    %v1020 = vadd.s32 %v986, 272
    %v1021 = vadd.s32 %v986, 280
    %v1022 = vadd.s32 %v986, 288
    %v1023 = vadd.s32 %v986, 296
    %v1024 = vadd.s32 %v986, 304
    %v1025 = vadd.s32 %v986, 312
    %v1026 = vadd.s32 %v986, 320
    %v1027 = vadd.s32 %v986, 328
    %v1028 = vadd.s32 %v986, 336
    %v1029 = vadd.s32 %v986, 344
    %v1030 = vadd.s32 %v986, 352
    %v1031 = vadd.s32 %v986, 360
    %v1032 = vadd.s32 %v986, 368
    %v1033 = vadd.s32 %v986, 376
    %vm1034 = vcmp.lt.s32.totalorder %v986, 0
    %v1035 = vsub.s32 0, %v986
    %v1036 = vsel %vm1034, %v1035, %v986
    %v1037 = vshrl.u32 %v1036, 4
    %v1038 = vand.u32 %v1036, 15
    %v1039 = vsub.s32 0, %v1038
    %v1040 = vsel %vm1034, %v1039, %v1038
    %vm1041 = vcmp.lt.s32.totalorder %v987, 0
    %v1042 = vsub.s32 0, %v987
    %v1043 = vsel %vm1041, %v1042, %v987
    %v1044 = vshrl.u32 %v1043, 4
    %v1045 = vand.u32 %v1043, 15
    %v1046 = vsub.s32 0, %v1045
    %v1047 = vsel %vm1041, %v1046, %v1045
    %vm1048 = vcmp.lt.s32.totalorder %v988, 0
    %v1049 = vsub.s32 0, %v988
    %v1050 = vsel %vm1048, %v1049, %v988
    %v1051 = vshrl.u32 %v1050, 4
    %v1052 = vand.u32 %v1050, 15
    %v1053 = vsub.s32 0, %v1052
    %v1054 = vsel %vm1048, %v1053, %v1052
    %vm1055 = vcmp.lt.s32.totalorder %v989, 0
    %v1056 = vsub.s32 0, %v989
    %v1057 = vsel %vm1055, %v1056, %v989
    %v1058 = vshrl.u32 %v1057, 4
    %v1059 = vand.u32 %v1057, 15
    %v1060 = vsub.s32 0, %v1059
    %v1061 = vsel %vm1055, %v1060, %v1059
    %vm1062 = vcmp.lt.s32.totalorder %v990, 0
    %v1063 = vsub.s32 0, %v990
    %v1064 = vsel %vm1062, %v1063, %v990
    %v1065 = vshrl.u32 %v1064, 4
    %v1066 = vand.u32 %v1064, 15
    %v1067 = vsub.s32 0, %v1066
    %v1068 = vsel %vm1062, %v1067, %v1066
    %vm1069 = vcmp.lt.s32.totalorder %v991, 0
    %v1070 = vsub.s32 0, %v991
    %v1071 = vsel %vm1069, %v1070, %v991
    %v1072 = vshrl.u32 %v1071, 4
    %v1073 = vand.u32 %v1071, 15
    %v1074 = vsub.s32 0, %v1073
    %v1075 = vsel %vm1069, %v1074, %v1073
    %vm1076 = vcmp.lt.s32.totalorder %v992, 0
    %v1077 = vsub.s32 0, %v992
    %v1078 = vsel %vm1076, %v1077, %v992
    %v1079 = vshrl.u32 %v1078, 4
    %v1080 = vand.u32 %v1078, 15
    %v1081 = vsub.s32 0, %v1080
    %v1082 = vsel %vm1076, %v1081, %v1080
    %vm1083 = vcmp.lt.s32.totalorder %v993, 0
    %v1084 = vsub.s32 0, %v993
    %v1085 = vsel %vm1083, %v1084, %v993
    %v1086 = vshrl.u32 %v1085, 4
    %v1087 = vand.u32 %v1085, 15
    %v1088 = vsub.s32 0, %v1087
    %v1089 = vsel %vm1083, %v1088, %v1087
    %vm1090 = vcmp.lt.s32.totalorder %v994, 0
    %v1091 = vsub.s32 0, %v994
    %v1092 = vsel %vm1090, %v1091, %v994
    %v1093 = vshrl.u32 %v1092, 4
    %v1094 = vand.u32 %v1092, 15
    %v1095 = vsub.s32 0, %v1094
    %v1096 = vsel %vm1090, %v1095, %v1094
    %vm1097 = vcmp.lt.s32.totalorder %v995, 0
    %v1098 = vsub.s32 0, %v995
    %v1099 = vsel %vm1097, %v1098, %v995
    %v1100 = vshrl.u32 %v1099, 4
    %v1101 = vand.u32 %v1099, 15
    %v1102 = vsub.s32 0, %v1101
    %v1103 = vsel %vm1097, %v1102, %v1101
    %vm1104 = vcmp.lt.s32.totalorder %v996, 0
    %v1105 = vsub.s32 0, %v996
    %v1106 = vsel %vm1104, %v1105, %v996
    %v1107 = vshrl.u32 %v1106, 4
    %v1108 = vand.u32 %v1106, 15
    %v1109 = vsub.s32 0, %v1108
    %v1110 = vsel %vm1104, %v1109, %v1108
    %vm1111 = vcmp.lt.s32.totalorder %v997, 0
    %v1112 = vsub.s32 0, %v997
    %v1113 = vsel %vm1111, %v1112, %v997
    %v1114 = vshrl.u32 %v1113, 4
    %v1115 = vand.u32 %v1113, 15
    %v1116 = vsub.s32 0, %v1115
    %v1117 = vsel %vm1111, %v1116, %v1115
    %vm1118 = vcmp.lt.s32.totalorder %v998, 0
    %v1119 = vsub.s32 0, %v998
    %v1120 = vsel %vm1118, %v1119, %v998
    %v1121 = vshrl.u32 %v1120, 4
    %v1122 = vand.u32 %v1120, 15
    %v1123 = vsub.s32 0, %v1122
    %v1124 = vsel %vm1118, %v1123, %v1122
    %vm1125 = vcmp.lt.s32.totalorder %v999, 0
    %v1126 = vsub.s32 0, %v999
    %v1127 = vsel %vm1125, %v1126, %v999
    %v1128 = vshrl.u32 %v1127, 4
    %v1129 = vand.u32 %v1127, 15
    %v1130 = vsub.s32 0, %v1129
    %v1131 = vsel %vm1125, %v1130, %v1129
    %vm1132 = vcmp.lt.s32.totalorder %v1000, 0
    %v1133 = vsub.s32 0, %v1000
    %v1134 = vsel %vm1132, %v1133, %v1000
    %v1135 = vshrl.u32 %v1134, 4
    %v1136 = vand.u32 %v1134, 15
    %v1137 = vsub.s32 0, %v1136
    %v1138 = vsel %vm1132, %v1137, %v1136
    %vm1139 = vcmp.lt.s32.totalorder %v1001, 0
    %v1140 = vsub.s32 0, %v1001
    %v1141 = vsel %vm1139, %v1140, %v1001
    %v1142 = vshrl.u32 %v1141, 4
    %v1143 = vand.u32 %v1141, 15
    %v1144 = vsub.s32 0, %v1143
    %v1145 = vsel %vm1139, %v1144, %v1143
    %vm1146 = vcmp.lt.s32.totalorder %v1002, 0
    %v1147 = vsub.s32 0, %v1002
    %v1148 = vsel %vm1146, %v1147, %v1002
    %v1149 = vshrl.u32 %v1148, 4
    %v1150 = vand.u32 %v1148, 15
    %v1151 = vsub.s32 0, %v1150
    %v1152 = vsel %vm1146, %v1151, %v1150
    %vm1153 = vcmp.lt.s32.totalorder %v1003, 0
    %v1154 = vsub.s32 0, %v1003
    %v1155 = vsel %vm1153, %v1154, %v1003
    %v1156 = vshrl.u32 %v1155, 4
    %v1157 = vand.u32 %v1155, 15
    %v1158 = vsub.s32 0, %v1157
    %v1159 = vsel %vm1153, %v1158, %v1157
    %vm1160 = vcmp.lt.s32.totalorder %v1004, 0
    %v1161 = vsub.s32 0, %v1004
    %v1162 = vsel %vm1160, %v1161, %v1004
    %v1163 = vshrl.u32 %v1162, 4
    %v1164 = vand.u32 %v1162, 15
    %v1165 = vsub.s32 0, %v1164
    %v1166 = vsel %vm1160, %v1165, %v1164
    %vm1167 = vcmp.lt.s32.totalorder %v1005, 0
    %v1168 = vsub.s32 0, %v1005
    %v1169 = vsel %vm1167, %v1168, %v1005
    %v1170 = vshrl.u32 %v1169, 4
    %v1171 = vand.u32 %v1169, 15
    %v1172 = vsub.s32 0, %v1171
    %v1173 = vsel %vm1167, %v1172, %v1171
    %vm1174 = vcmp.lt.s32.totalorder %v1006, 0
    %v1175 = vsub.s32 0, %v1006
    %v1176 = vsel %vm1174, %v1175, %v1006
    %v1177 = vshrl.u32 %v1176, 4
    %v1178 = vand.u32 %v1176, 15
    %v1179 = vsub.s32 0, %v1178
    %v1180 = vsel %vm1174, %v1179, %v1178
    %vm1181 = vcmp.lt.s32.totalorder %v1007, 0
    %v1182 = vsub.s32 0, %v1007
    %v1183 = vsel %vm1181, %v1182, %v1007
    %v1184 = vshrl.u32 %v1183, 4
    %v1185 = vand.u32 %v1183, 15
    %v1186 = vsub.s32 0, %v1185
    %v1187 = vsel %vm1181, %v1186, %v1185
    %vm1188 = vcmp.lt.s32.totalorder %v1008, 0
    %v1189 = vsub.s32 0, %v1008
    %v1190 = vsel %vm1188, %v1189, %v1008
    %v1191 = vshrl.u32 %v1190, 4
    %v1192 = vand.u32 %v1190, 15
    %v1193 = vsub.s32 0, %v1192
    %v1194 = vsel %vm1188, %v1193, %v1192
    %vm1195 = vcmp.lt.s32.totalorder %v1009, 0
    %v1196 = vsub.s32 0, %v1009
    %v1197 = vsel %vm1195, %v1196, %v1009
    %v1198 = vshrl.u32 %v1197, 4
    %v1199 = vand.u32 %v1197, 15
    %v1200 = vsub.s32 0, %v1199
    %v1201 = vsel %vm1195, %v1200, %v1199
    %vm1202 = vcmp.lt.s32.totalorder %v1010, 0
    %v1203 = vsub.s32 0, %v1010
    %v1204 = vsel %vm1202, %v1203, %v1010
    %v1205 = vshrl.u32 %v1204, 4
    %v1206 = vand.u32 %v1204, 15
    %v1207 = vsub.s32 0, %v1206
    %v1208 = vsel %vm1202, %v1207, %v1206
    %vm1209 = vcmp.lt.s32.totalorder %v1011, 0
    %v1210 = vsub.s32 0, %v1011
    %v1211 = vsel %vm1209, %v1210, %v1011
    %v1212 = vshrl.u32 %v1211, 4
    %v1213 = vand.u32 %v1211, 15
    %v1214 = vsub.s32 0, %v1213
    %v1215 = vsel %vm1209, %v1214, %v1213
    %vm1216 = vcmp.lt.s32.totalorder %v1012, 0
    %v1217 = vsub.s32 0, %v1012
    %v1218 = vsel %vm1216, %v1217, %v1012
    %v1219 = vshrl.u32 %v1218, 4
    %v1220 = vand.u32 %v1218, 15
    %v1221 = vsub.s32 0, %v1220
    %v1222 = vsel %vm1216, %v1221, %v1220
    %vm1223 = vcmp.lt.s32.totalorder %v1013, 0
    %v1224 = vsub.s32 0, %v1013
    %v1225 = vsel %vm1223, %v1224, %v1013
    %v1226 = vshrl.u32 %v1225, 4
    %v1227 = vand.u32 %v1225, 15
    %v1228 = vsub.s32 0, %v1227
    %v1229 = vsel %vm1223, %v1228, %v1227
    %vm1230 = vcmp.lt.s32.totalorder %v1014, 0
    %v1231 = vsub.s32 0, %v1014
    %v1232 = vsel %vm1230, %v1231, %v1014
    %v1233 = vshrl.u32 %v1232, 4
    %v1234 = vand.u32 %v1232, 15
    %v1235 = vsub.s32 0, %v1234
    %v1236 = vsel %vm1230, %v1235, %v1234
    %vm1237 = vcmp.lt.s32.totalorder %v1015, 0
    %v1238 = vsub.s32 0, %v1015
    %v1239 = vsel %vm1237, %v1238, %v1015
    %v1240 = vshrl.u32 %v1239, 4
    %v1241 = vand.u32 %v1239, 15
    %v1242 = vsub.s32 0, %v1241
    %v1243 = vsel %vm1237, %v1242, %v1241
    %vm1244 = vcmp.lt.s32.totalorder %v1016, 0
    %v1245 = vsub.s32 0, %v1016
    %v1246 = vsel %vm1244, %v1245, %v1016
    %v1247 = vshrl.u32 %v1246, 4
    %v1248 = vand.u32 %v1246, 15
    %v1249 = vsub.s32 0, %v1248
    %v1250 = vsel %vm1244, %v1249, %v1248
    %vm1251 = vcmp.lt.s32.totalorder %v1017, 0
    %v1252 = vsub.s32 0, %v1017
    %v1253 = vsel %vm1251, %v1252, %v1017
    %v1254 = vshrl.u32 %v1253, 4
    %v1255 = vand.u32 %v1253, 15
    %v1256 = vsub.s32 0, %v1255
    %v1257 = vsel %vm1251, %v1256, %v1255
    %vm1258 = vcmp.lt.s32.totalorder %v1018, 0
    %v1259 = vsub.s32 0, %v1018
    %v1260 = vsel %vm1258, %v1259, %v1018
    %v1261 = vshrl.u32 %v1260, 4
    %v1262 = vand.u32 %v1260, 15
    %v1263 = vsub.s32 0, %v1262
    %v1264 = vsel %vm1258, %v1263, %v1262
    %vm1265 = vcmp.lt.s32.totalorder %v1019, 0
    %v1266 = vsub.s32 0, %v1019
    %v1267 = vsel %vm1265, %v1266, %v1019
    %v1268 = vshrl.u32 %v1267, 4
    %v1269 = vand.u32 %v1267, 15
    %v1270 = vsub.s32 0, %v1269
    %v1271 = vsel %vm1265, %v1270, %v1269
    %vm1272 = vcmp.lt.s32.totalorder %v1020, 0
    %v1273 = vsub.s32 0, %v1020
    %v1274 = vsel %vm1272, %v1273, %v1020
    %v1275 = vshrl.u32 %v1274, 4
    %v1276 = vand.u32 %v1274, 15
    %v1277 = vsub.s32 0, %v1276
    %v1278 = vsel %vm1272, %v1277, %v1276
    %vm1279 = vcmp.lt.s32.totalorder %v1021, 0
    %v1280 = vsub.s32 0, %v1021
    %v1281 = vsel %vm1279, %v1280, %v1021
    %v1282 = vshrl.u32 %v1281, 4
    %v1283 = vand.u32 %v1281, 15
    %v1284 = vsub.s32 0, %v1283
    %v1285 = vsel %vm1279, %v1284, %v1283
    %vm1286 = vcmp.lt.s32.totalorder %v1022, 0
    %v1287 = vsub.s32 0, %v1022
    %v1288 = vsel %vm1286, %v1287, %v1022
    %v1289 = vshrl.u32 %v1288, 4
    %v1290 = vand.u32 %v1288, 15
    %v1291 = vsub.s32 0, %v1290
    %v1292 = vsel %vm1286, %v1291, %v1290
    %vm1293 = vcmp.lt.s32.totalorder %v1023, 0
    %v1294 = vsub.s32 0, %v1023
    %v1295 = vsel %vm1293, %v1294, %v1023
    %v1296 = vshrl.u32 %v1295, 4
    %v1297 = vand.u32 %v1295, 15
    %v1298 = vsub.s32 0, %v1297
    %v1299 = vsel %vm1293, %v1298, %v1297
    %vm1300 = vcmp.lt.s32.totalorder %v1024, 0
    %v1301 = vsub.s32 0, %v1024
    %v1302 = vsel %vm1300, %v1301, %v1024
    %v1303 = vshrl.u32 %v1302, 4
    %v1304 = vand.u32 %v1302, 15
    %v1305 = vsub.s32 0, %v1304
    %v1306 = vsel %vm1300, %v1305, %v1304
    %vm1307 = vcmp.lt.s32.totalorder %v1025, 0
    %v1308 = vsub.s32 0, %v1025
    %v1309 = vsel %vm1307, %v1308, %v1025
    %v1310 = vshrl.u32 %v1309, 4
    %v1311 = vand.u32 %v1309, 15
    %v1312 = vsub.s32 0, %v1311
    %v1313 = vsel %vm1307, %v1312, %v1311
    %vm1314 = vcmp.lt.s32.totalorder %v1026, 0
    %v1315 = vsub.s32 0, %v1026
    %v1316 = vsel %vm1314, %v1315, %v1026
    %v1317 = vshrl.u32 %v1316, 4
    %v1318 = vand.u32 %v1316, 15
    %v1319 = vsub.s32 0, %v1318
    %v1320 = vsel %vm1314, %v1319, %v1318
    %vm1321 = vcmp.lt.s32.totalorder %v1027, 0
    %v1322 = vsub.s32 0, %v1027
    %v1323 = vsel %vm1321, %v1322, %v1027
    %v1324 = vshrl.u32 %v1323, 4
    %v1325 = vand.u32 %v1323, 15
    %v1326 = vsub.s32 0, %v1325
    %v1327 = vsel %vm1321, %v1326, %v1325
    %vm1328 = vcmp.lt.s32.totalorder %v1028, 0
    %v1329 = vsub.s32 0, %v1028
    %v1330 = vsel %vm1328, %v1329, %v1028
    %v1331 = vshrl.u32 %v1330, 4
    %v1332 = vand.u32 %v1330, 15
    %v1333 = vsub.s32 0, %v1332
    %v1334 = vsel %vm1328, %v1333, %v1332
    %vm1335 = vcmp.lt.s32.totalorder %v1029, 0
    %v1336 = vsub.s32 0, %v1029
    %v1337 = vsel %vm1335, %v1336, %v1029
    %v1338 = vshrl.u32 %v1337, 4
    %v1339 = vand.u32 %v1337, 15
    %v1340 = vsub.s32 0, %v1339
    %v1341 = vsel %vm1335, %v1340, %v1339
    %vm1342 = vcmp.lt.s32.totalorder %v1030, 0
    %v1343 = vsub.s32 0, %v1030
    %v1344 = vsel %vm1342, %v1343, %v1030
    %v1345 = vshrl.u32 %v1344, 4
    %v1346 = vand.u32 %v1344, 15
    %v1347 = vsub.s32 0, %v1346
    %v1348 = vsel %vm1342, %v1347, %v1346
    %vm1349 = vcmp.lt.s32.totalorder %v1031, 0
    %v1350 = vsub.s32 0, %v1031
    %v1351 = vsel %vm1349, %v1350, %v1031
    %v1352 = vshrl.u32 %v1351, 4
    %v1353 = vand.u32 %v1351, 15
    %v1354 = vsub.s32 0, %v1353
    %v1355 = vsel %vm1349, %v1354, %v1353
    %vm1356 = vcmp.lt.s32.totalorder %v1032, 0
    %v1357 = vsub.s32 0, %v1032
    %v1358 = vsel %vm1356, %v1357, %v1032
    %v1359 = vshrl.u32 %v1358, 4
    %v1360 = vand.u32 %v1358, 15
    %v1361 = vsub.s32 0, %v1360
    %v1362 = vsel %vm1356, %v1361, %v1360
    %vm1363 = vcmp.lt.s32.totalorder %v1033, 0
    %v1364 = vsub.s32 0, %v1033
    %v1365 = vsel %vm1363, %v1364, %v1033
    %v1366 = vshrl.u32 %v1365, 4
    %v1367 = vand.u32 %v1365, 15
    %v1368 = vsub.s32 0, %v1367
    %v1369 = vsel %vm1363, %v1368, %v1367
    %vm1370 = vcmp.ne.s32.totalorder %v1040, 0
    %vm1371 = vcmp.ne.s32.totalorder %v1047, 0
    %vm1372 = vcmp.ne.s32.totalorder %v1054, 0
    %vm1373 = vcmp.ne.s32.totalorder %v1061, 0
    %vm1374 = vcmp.ne.s32.totalorder %v1068, 0
    %vm1375 = vcmp.ne.s32.totalorder %v1075, 0
    %vm1376 = vcmp.ne.s32.totalorder %v1082, 0
    %vm1377 = vcmp.ne.s32.totalorder %v1089, 0
    %vm1378 = vcmp.ne.s32.totalorder %v1096, 0
    %vm1379 = vcmp.ne.s32.totalorder %v1103, 0
    %vm1380 = vcmp.ne.s32.totalorder %v1110, 0
    %vm1381 = vcmp.ne.s32.totalorder %v1117, 0
    %vm1382 = vcmp.ne.s32.totalorder %v1124, 0
    %vm1383 = vcmp.ne.s32.totalorder %v1131, 0
    %vm1384 = vcmp.ne.s32.totalorder %v1138, 0
    %vm1385 = vcmp.ne.s32.totalorder %v1145, 0
    %vm1386 = vcmp.ne.s32.totalorder %v1152, 0
    %vm1387 = vcmp.ne.s32.totalorder %v1159, 0
    %vm1388 = vcmp.ne.s32.totalorder %v1166, 0
    %vm1389 = vcmp.ne.s32.totalorder %v1173, 0
    %vm1390 = vcmp.ne.s32.totalorder %v1180, 0
    %vm1391 = vcmp.ne.s32.totalorder %v1187, 0
    %vm1392 = vcmp.ne.s32.totalorder %v1194, 0
    %vm1393 = vcmp.ne.s32.totalorder %v1201, 0
    %vm1394 = vcmp.ne.s32.totalorder %v1208, 0
    %vm1395 = vcmp.ne.s32.totalorder %v1215, 0
    %vm1396 = vcmp.ne.s32.totalorder %v1222, 0
    %vm1397 = vcmp.ne.s32.totalorder %v1229, 0
    %vm1398 = vcmp.ne.s32.totalorder %v1236, 0
    %vm1399 = vcmp.ne.s32.totalorder %v1243, 0
    %vm1400 = vcmp.ne.s32.totalorder %v1250, 0
    %vm1401 = vcmp.ne.s32.totalorder %v1257, 0
    %vm1402 = vcmp.ne.s32.totalorder %v1264, 0
    %vm1403 = vcmp.ne.s32.totalorder %v1271, 0
    %vm1404 = vcmp.ne.s32.totalorder %v1278, 0
    %vm1405 = vcmp.ne.s32.totalorder %v1285, 0
    %vm1406 = vcmp.ne.s32.totalorder %v1292, 0
    %vm1407 = vcmp.ne.s32.totalorder %v1299, 0
    %vm1408 = vcmp.ne.s32.totalorder %v1306, 0
    %vm1409 = vcmp.ne.s32.totalorder %v1313, 0
    %vm1410 = vcmp.ne.s32.totalorder %v1320, 0
    %vm1411 = vcmp.ne.s32.totalorder %v1327, 0
    %vm1412 = vcmp.ne.s32.totalorder %v1334, 0
    %vm1413 = vcmp.ne.s32.totalorder %v1341, 0
    %vm1414 = vcmp.ne.s32.totalorder %v1348, 0
    %vm1415 = vcmp.ne.s32.totalorder %v1355, 0
    %vm1416 = vcmp.ne.s32.totalorder %v1362, 0
    %vm1417 = vcmp.ne.s32.totalorder %v1369, 0
    %vm1418 = vcmp.lt.s32.totalorder %v1040, 0
    %vm1419 = vcmp.lt.s32.totalorder %v1047, 0
    %vm1420 = vcmp.lt.s32.totalorder %v1054, 0
    %vm1421 = vcmp.lt.s32.totalorder %v1061, 0
    %vm1422 = vcmp.lt.s32.totalorder %v1068, 0
    %vm1423 = vcmp.lt.s32.totalorder %v1075, 0
    %vm1424 = vcmp.lt.s32.totalorder %v1082, 0
    %vm1425 = vcmp.lt.s32.totalorder %v1089, 0
    %vm1426 = vcmp.lt.s32.totalorder %v1096, 0
    %vm1427 = vcmp.lt.s32.totalorder %v1103, 0
    %vm1428 = vcmp.lt.s32.totalorder %v1110, 0
    %vm1429 = vcmp.lt.s32.totalorder %v1117, 0
    %vm1430 = vcmp.lt.s32.totalorder %v1124, 0
    %vm1431 = vcmp.lt.s32.totalorder %v1131, 0
    %vm1432 = vcmp.lt.s32.totalorder %v1138, 0
    %vm1433 = vcmp.lt.s32.totalorder %v1145, 0
    %vm1434 = vcmp.lt.s32.totalorder %v1152, 0
    %vm1435 = vcmp.lt.s32.totalorder %v1159, 0
    %vm1436 = vcmp.lt.s32.totalorder %v1166, 0
    %vm1437 = vcmp.lt.s32.totalorder %v1173, 0
    %vm1438 = vcmp.lt.s32.totalorder %v1180, 0
    %vm1439 = vcmp.lt.s32.totalorder %v1187, 0
    %vm1440 = vcmp.lt.s32.totalorder %v1194, 0
    %vm1441 = vcmp.lt.s32.totalorder %v1201, 0
    %vm1442 = vcmp.lt.s32.totalorder %v1208, 0
    %vm1443 = vcmp.lt.s32.totalorder %v1215, 0
    %vm1444 = vcmp.lt.s32.totalorder %v1222, 0
    %vm1445 = vcmp.lt.s32.totalorder %v1229, 0
    %vm1446 = vcmp.lt.s32.totalorder %v1236, 0
    %vm1447 = vcmp.lt.s32.totalorder %v1243, 0
    %vm1448 = vcmp.lt.s32.totalorder %v1250, 0
    %vm1449 = vcmp.lt.s32.totalorder %v1257, 0
    %vm1450 = vcmp.lt.s32.totalorder %v1264, 0
    %vm1451 = vcmp.lt.s32.totalorder %v1271, 0
    %vm1452 = vcmp.lt.s32.totalorder %v1278, 0
    %vm1453 = vcmp.lt.s32.totalorder %v1285, 0
    %vm1454 = vcmp.lt.s32.totalorder %v1292, 0
    %vm1455 = vcmp.lt.s32.totalorder %v1299, 0
    %vm1456 = vcmp.lt.s32.totalorder %v1306, 0
    %vm1457 = vcmp.lt.s32.totalorder %v1313, 0
    %vm1458 = vcmp.lt.s32.totalorder %v1320, 0
    %vm1459 = vcmp.lt.s32.totalorder %v1327, 0
    %vm1460 = vcmp.lt.s32.totalorder %v1334, 0
    %vm1461 = vcmp.lt.s32.totalorder %v1341, 0
    %vm1462 = vcmp.lt.s32.totalorder %v1348, 0
    %vm1463 = vcmp.lt.s32.totalorder %v1355, 0
    %vm1464 = vcmp.lt.s32.totalorder %v1362, 0
    %vm1465 = vcmp.lt.s32.totalorder %v1369, 0
    %vm1466 = vmand %vm1418, %vm1370
    %vm1467 = vmand %vm1419, %vm1371
    %vm1468 = vmand %vm1420, %vm1372
    %vm1469 = vmand %vm1421, %vm1373
    %vm1470 = vmand %vm1422, %vm1374
    %vm1471 = vmand %vm1423, %vm1375
    %vm1472 = vmand %vm1424, %vm1376
    %vm1473 = vmand %vm1425, %vm1377
    %vm1474 = vmand %vm1426, %vm1378
    %vm1475 = vmand %vm1427, %vm1379
    %vm1476 = vmand %vm1428, %vm1380
    %vm1477 = vmand %vm1429, %vm1381
    %vm1478 = vmand %vm1430, %vm1382
    %vm1479 = vmand %vm1431, %vm1383
    %vm1480 = vmand %vm1432, %vm1384
    %vm1481 = vmand %vm1433, %vm1385
    %vm1482 = vmand %vm1434, %vm1386
    %vm1483 = vmand %vm1435, %vm1387
    %vm1484 = vmand %vm1436, %vm1388
    %vm1485 = vmand %vm1437, %vm1389
    %vm1486 = vmand %vm1438, %vm1390
    %vm1487 = vmand %vm1439, %vm1391
    %vm1488 = vmand %vm1440, %vm1392
    %vm1489 = vmand %vm1441, %vm1393
    %vm1490 = vmand %vm1442, %vm1394
    %vm1491 = vmand %vm1443, %vm1395
    %vm1492 = vmand %vm1444, %vm1396
    %vm1493 = vmand %vm1445, %vm1397
    %vm1494 = vmand %vm1446, %vm1398
    %vm1495 = vmand %vm1447, %vm1399
    %vm1496 = vmand %vm1448, %vm1400
    %vm1497 = vmand %vm1449, %vm1401
    %vm1498 = vmand %vm1450, %vm1402
    %vm1499 = vmand %vm1451, %vm1403
    %vm1500 = vmand %vm1452, %vm1404
    %vm1501 = vmand %vm1453, %vm1405
    %vm1502 = vmand %vm1454, %vm1406
    %vm1503 = vmand %vm1455, %vm1407
    %vm1504 = vmand %vm1456, %vm1408
    %vm1505 = vmand %vm1457, %vm1409
    %vm1506 = vmand %vm1458, %vm1410
    %vm1507 = vmand %vm1459, %vm1411
    %vm1508 = vmand %vm1460, %vm1412
    %vm1509 = vmand %vm1461, %vm1413
    %vm1510 = vmand %vm1462, %vm1414
    %vm1511 = vmand %vm1463, %vm1415
    %vm1512 = vmand %vm1464, %vm1416
    %vm1513 = vmand %vm1465, %vm1417
    %v1514 = vadd.s32 %v1040, 16
    %v1515 = vadd.s32 %v1047, 16
    %v1516 = vadd.s32 %v1054, 16
    %v1517 = vadd.s32 %v1061, 16
    %v1518 = vadd.s32 %v1068, 16
    %v1519 = vadd.s32 %v1075, 16
    %v1520 = vadd.s32 %v1082, 16
    %v1521 = vadd.s32 %v1089, 16
    %v1522 = vadd.s32 %v1096, 16
    %v1523 = vadd.s32 %v1103, 16
    %v1524 = vadd.s32 %v1110, 16
    %v1525 = vadd.s32 %v1117, 16
    %v1526 = vadd.s32 %v1124, 16
    %v1527 = vadd.s32 %v1131, 16
    %v1528 = vadd.s32 %v1138, 16
    %v1529 = vadd.s32 %v1145, 16
    %v1530 = vadd.s32 %v1152, 16
    %v1531 = vadd.s32 %v1159, 16
    %v1532 = vadd.s32 %v1166, 16
    %v1533 = vadd.s32 %v1173, 16
    %v1534 = vadd.s32 %v1180, 16
    %v1535 = vadd.s32 %v1187, 16
    %v1536 = vadd.s32 %v1194, 16
    %v1537 = vadd.s32 %v1201, 16
    %v1538 = vadd.s32 %v1208, 16
    %v1539 = vadd.s32 %v1215, 16
    %v1540 = vadd.s32 %v1222, 16
    %v1541 = vadd.s32 %v1229, 16
    %v1542 = vadd.s32 %v1236, 16
    %v1543 = vadd.s32 %v1243, 16
    %v1544 = vadd.s32 %v1250, 16
    %v1545 = vadd.s32 %v1257, 16
    %v1546 = vadd.s32 %v1264, 16
    %v1547 = vadd.s32 %v1271, 16
    %v1548 = vadd.s32 %v1278, 16
    %v1549 = vadd.s32 %v1285, 16
    %v1550 = vadd.s32 %v1292, 16
    %v1551 = vadd.s32 %v1299, 16
    %v1552 = vadd.s32 %v1306, 16
    %v1553 = vadd.s32 %v1313, 16
    %v1554 = vadd.s32 %v1320, 16
    %v1555 = vadd.s32 %v1327, 16
    %v1556 = vadd.s32 %v1334, 16
    %v1557 = vadd.s32 %v1341, 16
    %v1558 = vadd.s32 %v1348, 16
    %v1559 = vadd.s32 %v1355, 16
    %v1560 = vadd.s32 %v1362, 16
    %v1561 = vadd.s32 %v1369, 16
    %v1562 = vsel %vm1466, %v1514, %v1040
    %v1563 = vsel %vm1467, %v1515, %v1047
    %v1564 = vsel %vm1468, %v1516, %v1054
    %v1565 = vsel %vm1469, %v1517, %v1061
    %v1566 = vsel %vm1470, %v1518, %v1068
    %v1567 = vsel %vm1471, %v1519, %v1075
    %v1568 = vsel %vm1472, %v1520, %v1082
    %v1569 = vsel %vm1473, %v1521, %v1089
    %v1570 = vsel %vm1474, %v1522, %v1096
    %v1571 = vsel %vm1475, %v1523, %v1103
    %v1572 = vsel %vm1476, %v1524, %v1110
    %v1573 = vsel %vm1477, %v1525, %v1117
    %v1574 = vsel %vm1478, %v1526, %v1124
    %v1575 = vsel %vm1479, %v1527, %v1131
    %v1576 = vsel %vm1480, %v1528, %v1138
    %v1577 = vsel %vm1481, %v1529, %v1145
    %v1578 = vsel %vm1482, %v1530, %v1152
    %v1579 = vsel %vm1483, %v1531, %v1159
    %v1580 = vsel %vm1484, %v1532, %v1166
    %v1581 = vsel %vm1485, %v1533, %v1173
    %v1582 = vsel %vm1486, %v1534, %v1180
    %v1583 = vsel %vm1487, %v1535, %v1187
    %v1584 = vsel %vm1488, %v1536, %v1194
    %v1585 = vsel %vm1489, %v1537, %v1201
    %v1586 = vsel %vm1490, %v1538, %v1208
    %v1587 = vsel %vm1491, %v1539, %v1215
    %v1588 = vsel %vm1492, %v1540, %v1222
    %v1589 = vsel %vm1493, %v1541, %v1229
    %v1590 = vsel %vm1494, %v1542, %v1236
    %v1591 = vsel %vm1495, %v1543, %v1243
    %v1592 = vsel %vm1496, %v1544, %v1250
    %v1593 = vsel %vm1497, %v1545, %v1257
    %v1594 = vsel %vm1498, %v1546, %v1264
    %v1595 = vsel %vm1499, %v1547, %v1271
    %v1596 = vsel %vm1500, %v1548, %v1278
    %v1597 = vsel %vm1501, %v1549, %v1285
    %v1598 = vsel %vm1502, %v1550, %v1292
    %v1599 = vsel %vm1503, %v1551, %v1299
    %v1600 = vsel %vm1504, %v1552, %v1306
    %v1601 = vsel %vm1505, %v1553, %v1313
    %v1602 = vsel %vm1506, %v1554, %v1320
    %v1603 = vsel %vm1507, %v1555, %v1327
    %v1604 = vsel %vm1508, %v1556, %v1334
    %v1605 = vsel %vm1509, %v1557, %v1341
    %v1606 = vsel %vm1510, %v1558, %v1348
    %v1607 = vsel %vm1511, %v1559, %v1355
    %v1608 = vsel %vm1512, %v1560, %v1362
    %v1609 = vsel %vm1513, %v1561, %v1369
    %vm1610 = vcmp.eq.s32.totalorder %v1562, 0
    %vm1611 = vcmp.eq.s32.totalorder %v1563, 0
    %vm1612 = vcmp.eq.s32.totalorder %v1564, 0
    %vm1613 = vcmp.eq.s32.totalorder %v1565, 0
    %vm1614 = vcmp.eq.s32.totalorder %v1566, 0
    %vm1615 = vcmp.eq.s32.totalorder %v1567, 0
    %vm1616 = vcmp.eq.s32.totalorder %v1568, 0
    %vm1617 = vcmp.eq.s32.totalorder %v1569, 0
    %vm1618 = vcmp.eq.s32.totalorder %v1570, 0
    %vm1619 = vcmp.eq.s32.totalorder %v1571, 0
    %vm1620 = vcmp.eq.s32.totalorder %v1572, 0
    %vm1621 = vcmp.eq.s32.totalorder %v1573, 0
    %vm1622 = vcmp.eq.s32.totalorder %v1574, 0
    %vm1623 = vcmp.eq.s32.totalorder %v1575, 0
    %vm1624 = vcmp.eq.s32.totalorder %v1576, 0
    %vm1625 = vcmp.eq.s32.totalorder %v1577, 0
    %vm1626 = vcmp.eq.s32.totalorder %v1578, 0
    %vm1627 = vcmp.eq.s32.totalorder %v1579, 0
    %vm1628 = vcmp.eq.s32.totalorder %v1580, 0
    %vm1629 = vcmp.eq.s32.totalorder %v1581, 0
    %vm1630 = vcmp.eq.s32.totalorder %v1582, 0
    %vm1631 = vcmp.eq.s32.totalorder %v1583, 0
    %vm1632 = vcmp.eq.s32.totalorder %v1584, 0
    %vm1633 = vcmp.eq.s32.totalorder %v1585, 0
    %vm1634 = vcmp.eq.s32.totalorder %v1586, 0
    %vm1635 = vcmp.eq.s32.totalorder %v1587, 0
    %vm1636 = vcmp.eq.s32.totalorder %v1588, 0
    %vm1637 = vcmp.eq.s32.totalorder %v1589, 0
    %vm1638 = vcmp.eq.s32.totalorder %v1590, 0
    %vm1639 = vcmp.eq.s32.totalorder %v1591, 0
    %vm1640 = vcmp.eq.s32.totalorder %v1592, 0
    %vm1641 = vcmp.eq.s32.totalorder %v1593, 0
    %vm1642 = vcmp.eq.s32.totalorder %v1594, 0
    %vm1643 = vcmp.eq.s32.totalorder %v1595, 0
    %vm1644 = vcmp.eq.s32.totalorder %v1596, 0
    %vm1645 = vcmp.eq.s32.totalorder %v1597, 0
    %vm1646 = vcmp.eq.s32.totalorder %v1598, 0
    %vm1647 = vcmp.eq.s32.totalorder %v1599, 0
    %vm1648 = vcmp.eq.s32.totalorder %v1600, 0
    %vm1649 = vcmp.eq.s32.totalorder %v1601, 0
    %vm1650 = vcmp.eq.s32.totalorder %v1602, 0
    %vm1651 = vcmp.eq.s32.totalorder %v1603, 0
    %vm1652 = vcmp.eq.s32.totalorder %v1604, 0
    %vm1653 = vcmp.eq.s32.totalorder %v1605, 0
    %vm1654 = vcmp.eq.s32.totalorder %v1606, 0
    %vm1655 = vcmp.eq.s32.totalorder %v1607, 0
    %vm1656 = vcmp.eq.s32.totalorder %v1608, 0
    %vm1657 = vcmp.eq.s32.totalorder %v1609, 0
    %v1658 = vlaneseq
    %v1659 = vand.u32 %v1658, 127
    %vm1660 = vcmp.eq.s32.totalorder %v1659, 0
    %v1661 = vrot.slane %v279, 7
    %v1662 = vrot.slane %v294, 7
    %v1663 = vrot.slane %v309, 7
    %v1664 = vrot.slane %v324, 7
    %v1665 = vrot.slane %v339, 7
    %v1666 = vrot.slane %v354, 7
    %v1667 = vrot.slane %v369, 7
    %v1668 = vrot.slane %v384, 7
    %v1669 = vrot.slane %v399, 7
    %v1670 = vrot.slane %v414, 7
    %v1671 = vrot.slane %v429, 7
    %v1672 = vrot.slane %v444, 7
    %v1673 = vrot.slane %v459, 7
    %v1674 = vrot.slane %v474, 7
    %v1675 = vrot.slane %v489, 7
    %v1676 = vrot.slane %v504, 7
    %v1677 = vrot.slane %v519, 7
    %v1678 = vrot.slane %v534, 7
    %v1679 = vrot.slane %v549, 7
    %v1680 = vrot.slane %v564, 7
    %v1681 = vrot.slane %v579, 7
    %v1682 = vrot.slane %v594, 7
    %v1683 = vrot.slane %v609, 7
    %v1684 = vrot.slane %v624, 7
    %v1685 = vrot.slane %v639, 7
    %v1686 = vrot.slane %v654, 7
    %v1687 = vrot.slane %v669, 7
    %v1688 = vrot.slane %v684, 7
    %v1689 = vrot.slane %v699, 7
    %v1690 = vrot.slane %v714, 7
    %v1691 = vrot.slane %v729, 7
    %v1692 = vrot.slane %v744, 7
    %v1693 = vrot.slane %v759, 7
    %v1694 = vrot.slane %v774, 7
    %v1695 = vrot.slane %v789, 7
    %v1696 = vrot.slane %v804, 7
    %v1697 = vrot.slane %v819, 7
    %v1698 = vrot.slane %v834, 7
    %v1699 = vrot.slane %v849, 7
    %v1700 = vrot.slane %v864, 7
    %v1701 = vrot.slane %v879, 7
    %v1702 = vrot.slane %v894, 7
    %v1703 = vrot.slane %v909, 7
    %v1704 = vrot.slane %v924, 7
    %v1705 = vrot.slane %v939, 7
    %v1706 = vrot.slane %v954, 7
    %v1707 = vrot.slane %v969, 7
    %v1708 = vrot.slane %v984, 7
    %vm1709 = vcmp.lt.s32.totalorder %v986, 1
    %v1710 = vsel %vm1709, %v1707, %v1708
    %v1711 = vsel %vm1709, %v1706, %v1707
    %v1712 = vsel %vm1709, %v1705, %v1706
    %v1713 = vsel %vm1709, %v1704, %v1705
    %v1714 = vsel %vm1709, %v1703, %v1704
    %v1715 = vsel %vm1709, %v1702, %v1703
    %v1716 = vsel %vm1709, %v1701, %v1702
    %v1717 = vsel %vm1709, %v1700, %v1701
    %v1718 = vsel %vm1709, %v1699, %v1700
    %v1719 = vsel %vm1709, %v1698, %v1699
    %v1720 = vsel %vm1709, %v1697, %v1698
    %v1721 = vsel %vm1709, %v1696, %v1697
    %v1722 = vsel %vm1709, %v1695, %v1696
    %v1723 = vsel %vm1709, %v1694, %v1695
    %v1724 = vsel %vm1709, %v1693, %v1694
    %v1725 = vsel %vm1709, %v1692, %v1693
    %v1726 = vsel %vm1709, %v1691, %v1692
    %v1727 = vsel %vm1709, %v1690, %v1691
    %v1728 = vsel %vm1709, %v1689, %v1690
    %v1729 = vsel %vm1709, %v1688, %v1689
    %v1730 = vsel %vm1709, %v1687, %v1688
    %v1731 = vsel %vm1709, %v1686, %v1687
    %v1732 = vsel %vm1709, %v1685, %v1686
    %v1733 = vsel %vm1709, %v1684, %v1685
    %v1734 = vsel %vm1709, %v1683, %v1684
    %v1735 = vsel %vm1709, %v1682, %v1683
    %v1736 = vsel %vm1709, %v1681, %v1682
    %v1737 = vsel %vm1709, %v1680, %v1681
    %v1738 = vsel %vm1709, %v1679, %v1680
    %v1739 = vsel %vm1709, %v1678, %v1679
    %v1740 = vsel %vm1709, %v1677, %v1678
    %v1741 = vsel %vm1709, %v1676, %v1677
    %v1742 = vsel %vm1709, %v1675, %v1676
    %v1743 = vsel %vm1709, %v1674, %v1675
    %v1744 = vsel %vm1709, %v1673, %v1674
    %v1745 = vsel %vm1709, %v1672, %v1673
    %v1746 = vsel %vm1709, %v1671, %v1672
    %v1747 = vsel %vm1709, %v1670, %v1671
    %v1748 = vsel %vm1709, %v1669, %v1670
    %v1749 = vsel %vm1709, %v1668, %v1669
    %v1750 = vsel %vm1709, %v1667, %v1668
    %v1751 = vsel %vm1709, %v1666, %v1667
    %v1752 = vsel %vm1709, %v1665, %v1666
    %v1753 = vsel %vm1709, %v1664, %v1665
    %v1754 = vsel %vm1709, %v1663, %v1664
    %v1755 = vsel %vm1709, %v1662, %v1663
    %v1756 = vsel %vm1709, %v1661, %v1662
    %v1757 = vsel %vm1709, %v1708, %v1661
    %v1758 = vsel %vm1610, -1.0, %v1757
    %v1759 = vsel %vm1611, -1.0, %v1756
    %v1760 = vsel %vm1612, -1.0, %v1755
    %v1761 = vsel %vm1613, -1.0, %v1754
    %v1762 = vsel %vm1614, -1.0, %v1753
    %v1763 = vsel %vm1615, -1.0, %v1752
    %v1764 = vsel %vm1616, -1.0, %v1751
    %v1765 = vsel %vm1617, -1.0, %v1750
    %v1766 = vsel %vm1618, -1.0, %v1749
    %v1767 = vsel %vm1619, -1.0, %v1748
    %v1768 = vsel %vm1620, -1.0, %v1747
    %v1769 = vsel %vm1621, -1.0, %v1746
    %v1770 = vsel %vm1622, -1.0, %v1745
    %v1771 = vsel %vm1623, -1.0, %v1744
    %v1772 = vsel %vm1624, -1.0, %v1743
    %v1773 = vsel %vm1625, -1.0, %v1742
    %v1774 = vsel %vm1626, -1.0, %v1741
    %v1775 = vsel %vm1627, -1.0, %v1740
    %v1776 = vsel %vm1628, -1.0, %v1739
    %v1777 = vsel %vm1629, -1.0, %v1738
    %v1778 = vsel %vm1630, -1.0, %v1737
    %v1779 = vsel %vm1631, -1.0, %v1736
    %v1780 = vsel %vm1632, -1.0, %v1735
    %v1781 = vsel %vm1633, -1.0, %v1734
    %v1782 = vsel %vm1634, -1.0, %v1733
    %v1783 = vsel %vm1635, -1.0, %v1732
    %v1784 = vsel %vm1636, -1.0, %v1731
    %v1785 = vsel %vm1637, -1.0, %v1730
    %v1786 = vsel %vm1638, -1.0, %v1729
    %v1787 = vsel %vm1639, -1.0, %v1728
    %v1788 = vsel %vm1640, -1.0, %v1727
    %v1789 = vsel %vm1641, -1.0, %v1726
    %v1790 = vsel %vm1642, -1.0, %v1725
    %v1791 = vsel %vm1643, -1.0, %v1724
    %v1792 = vsel %vm1644, -1.0, %v1723
    %v1793 = vsel %vm1645, -1.0, %v1722
    %v1794 = vsel %vm1646, -1.0, %v1721
    %v1795 = vsel %vm1647, -1.0, %v1720
    %v1796 = vsel %vm1648, -1.0, %v1719
    %v1797 = vsel %vm1649, -1.0, %v1718
    %v1798 = vsel %vm1650, -1.0, %v1717
    %v1799 = vsel %vm1651, -1.0, %v1716
    %v1800 = vsel %vm1652, -1.0, %v1715
    %v1801 = vsel %vm1653, -1.0, %v1714
    %v1802 = vsel %vm1654, -1.0, %v1713
    %v1803 = vsel %vm1655, -1.0, %v1712
    %v1804 = vsel %vm1656, -1.0, %v1711
    %v1805 = vsel %vm1657, -1.0, %v1710
    %1806 = vrot.lane.b32.xlu0 %v279, 1
    %v1807 = vpop.permute.xlu0 %1806
    %1808 = vrot.lane.b32.xlu0 %v294, 1
    %v1809 = vpop.permute.xlu0 %1808
    %1810 = vrot.lane.b32.xlu0 %v309, 1
    %v1811 = vpop.permute.xlu0 %1810
    %1812 = vrot.lane.b32.xlu0 %v324, 1
    %v1813 = vpop.permute.xlu0 %1812
    %1814 = vrot.lane.b32.xlu0 %v339, 1
    %v1815 = vpop.permute.xlu0 %1814
    %1816 = vrot.lane.b32.xlu0 %v354, 1
    %v1817 = vpop.permute.xlu0 %1816
    %1818 = vrot.lane.b32.xlu0 %v369, 1
    %v1819 = vpop.permute.xlu0 %1818
    %1820 = vrot.lane.b32.xlu0 %v384, 1
    %v1821 = vpop.permute.xlu0 %1820
    %1822 = vrot.lane.b32.xlu0 %v399, 1
    %v1823 = vpop.permute.xlu0 %1822
    %1824 = vrot.lane.b32.xlu0 %v414, 1
    %v1825 = vpop.permute.xlu0 %1824
    %1826 = vrot.lane.b32.xlu0 %v429, 1
    %v1827 = vpop.permute.xlu0 %1826
    %1828 = vrot.lane.b32.xlu0 %v444, 1
    %v1829 = vpop.permute.xlu0 %1828
    %1830 = vrot.lane.b32.xlu0 %v459, 1
    %v1831 = vpop.permute.xlu0 %1830
    %1832 = vrot.lane.b32.xlu0 %v474, 1
    %v1833 = vpop.permute.xlu0 %1832
    %1834 = vrot.lane.b32.xlu0 %v489, 1
    %v1835 = vpop.permute.xlu0 %1834
    %1836 = vrot.lane.b32.xlu0 %v504, 1
    %v1837 = vpop.permute.xlu0 %1836
    %1838 = vrot.lane.b32.xlu0 %v519, 1
    %v1839 = vpop.permute.xlu0 %1838
    %1840 = vrot.lane.b32.xlu0 %v534, 1
    %v1841 = vpop.permute.xlu0 %1840
    %1842 = vrot.lane.b32.xlu0 %v549, 1
    %v1843 = vpop.permute.xlu0 %1842
    %1844 = vrot.lane.b32.xlu0 %v564, 1
    %v1845 = vpop.permute.xlu0 %1844
    %1846 = vrot.lane.b32.xlu0 %v579, 1
    %v1847 = vpop.permute.xlu0 %1846
    %1848 = vrot.lane.b32.xlu0 %v594, 1
    %v1849 = vpop.permute.xlu0 %1848
    %1850 = vrot.lane.b32.xlu0 %v609, 1
    %v1851 = vpop.permute.xlu0 %1850
    %1852 = vrot.lane.b32.xlu0 %v624, 1
    %v1853 = vpop.permute.xlu0 %1852
    %1854 = vrot.lane.b32.xlu0 %v639, 1
    %v1855 = vpop.permute.xlu0 %1854
    %1856 = vrot.lane.b32.xlu0 %v654, 1
    %v1857 = vpop.permute.xlu0 %1856
    %1858 = vrot.lane.b32.xlu0 %v669, 1
    %v1859 = vpop.permute.xlu0 %1858
    %1860 = vrot.lane.b32.xlu0 %v684, 1
    %v1861 = vpop.permute.xlu0 %1860
    %1862 = vrot.lane.b32.xlu0 %v699, 1
    %v1863 = vpop.permute.xlu0 %1862
    %1864 = vrot.lane.b32.xlu0 %v714, 1
    %v1865 = vpop.permute.xlu0 %1864
    %1866 = vrot.lane.b32.xlu0 %v729, 1
    %v1867 = vpop.permute.xlu0 %1866
    %1868 = vrot.lane.b32.xlu0 %v744, 1
    %v1869 = vpop.permute.xlu0 %1868
    %1870 = vrot.lane.b32.xlu0 %v759, 1
    %v1871 = vpop.permute.xlu0 %1870
    %1872 = vrot.lane.b32.xlu0 %v774, 1
    %v1873 = vpop.permute.xlu0 %1872
    %1874 = vrot.lane.b32.xlu0 %v789, 1
    %v1875 = vpop.permute.xlu0 %1874
    %1876 = vrot.lane.b32.xlu0 %v804, 1
    %v1877 = vpop.permute.xlu0 %1876
    %1878 = vrot.lane.b32.xlu0 %v819, 1
    %v1879 = vpop.permute.xlu0 %1878
    %1880 = vrot.lane.b32.xlu0 %v834, 1
    %v1881 = vpop.permute.xlu0 %1880
    %1882 = vrot.lane.b32.xlu0 %v849, 1
    %v1883 = vpop.permute.xlu0 %1882
    %1884 = vrot.lane.b32.xlu0 %v864, 1
    %v1885 = vpop.permute.xlu0 %1884
    %1886 = vrot.lane.b32.xlu0 %v879, 1
    %v1887 = vpop.permute.xlu0 %1886
    %1888 = vrot.lane.b32.xlu0 %v894, 1
    %v1889 = vpop.permute.xlu0 %1888
    %1890 = vrot.lane.b32.xlu0 %v909, 1
    %v1891 = vpop.permute.xlu0 %1890
    %1892 = vrot.lane.b32.xlu0 %v924, 1
    %v1893 = vpop.permute.xlu0 %1892
    %1894 = vrot.lane.b32.xlu0 %v939, 1
    %v1895 = vpop.permute.xlu0 %1894
    %1896 = vrot.lane.b32.xlu0 %v954, 1
    %v1897 = vpop.permute.xlu0 %1896
    %1898 = vrot.lane.b32.xlu0 %v969, 1
    %v1899 = vpop.permute.xlu0 %1898
    %1900 = vrot.lane.b32.xlu0 %v984, 1
    %v1901 = vpop.permute.xlu0 %1900
    %v1902 = vsel %vm1660, -1.0, %v1807
    %v1903 = vsel %vm1660, -1.0, %v1809
    %v1904 = vsel %vm1660, -1.0, %v1811
    %v1905 = vsel %vm1660, -1.0, %v1813
    %v1906 = vsel %vm1660, -1.0, %v1815
    %v1907 = vsel %vm1660, -1.0, %v1817
    %v1908 = vsel %vm1660, -1.0, %v1819
    %v1909 = vsel %vm1660, -1.0, %v1821
    %v1910 = vsel %vm1660, -1.0, %v1823
    %v1911 = vsel %vm1660, -1.0, %v1825
    %v1912 = vsel %vm1660, -1.0, %v1827
    %v1913 = vsel %vm1660, -1.0, %v1829
    %v1914 = vsel %vm1660, -1.0, %v1831
    %v1915 = vsel %vm1660, -1.0, %v1833
    %v1916 = vsel %vm1660, -1.0, %v1835
    %v1917 = vsel %vm1660, -1.0, %v1837
    %v1918 = vsel %vm1660, -1.0, %v1839
    %v1919 = vsel %vm1660, -1.0, %v1841
    %v1920 = vsel %vm1660, -1.0, %v1843
    %v1921 = vsel %vm1660, -1.0, %v1845
    %v1922 = vsel %vm1660, -1.0, %v1847
    %v1923 = vsel %vm1660, -1.0, %v1849
    %v1924 = vsel %vm1660, -1.0, %v1851
    %v1925 = vsel %vm1660, -1.0, %v1853
    %v1926 = vsel %vm1660, -1.0, %v1855
    %v1927 = vsel %vm1660, -1.0, %v1857
    %v1928 = vsel %vm1660, -1.0, %v1859
    %v1929 = vsel %vm1660, -1.0, %v1861
    %v1930 = vsel %vm1660, -1.0, %v1863
    %v1931 = vsel %vm1660, -1.0, %v1865
    %v1932 = vsel %vm1660, -1.0, %v1867
    %v1933 = vsel %vm1660, -1.0, %v1869
    %v1934 = vsel %vm1660, -1.0, %v1871
    %v1935 = vsel %vm1660, -1.0, %v1873
    %v1936 = vsel %vm1660, -1.0, %v1875
    %v1937 = vsel %vm1660, -1.0, %v1877
    %v1938 = vsel %vm1660, -1.0, %v1879
    %v1939 = vsel %vm1660, -1.0, %v1881
    %v1940 = vsel %vm1660, -1.0, %v1883
    %v1941 = vsel %vm1660, -1.0, %v1885
    %v1942 = vsel %vm1660, -1.0, %v1887
    %v1943 = vsel %vm1660, -1.0, %v1889
    %v1944 = vsel %vm1660, -1.0, %v1891
    %v1945 = vsel %vm1660, -1.0, %v1893
    %v1946 = vsel %vm1660, -1.0, %v1895
    %v1947 = vsel %vm1660, -1.0, %v1897
    %v1948 = vsel %vm1660, -1.0, %v1899
    %v1949 = vsel %vm1660, -1.0, %v1901
    %v1950 = vrot.slane %v1902, 7
    %v1951 = vrot.slane %v1903, 7
    %v1952 = vrot.slane %v1904, 7
    %v1953 = vrot.slane %v1905, 7
    %v1954 = vrot.slane %v1906, 7
    %v1955 = vrot.slane %v1907, 7
    %v1956 = vrot.slane %v1908, 7
    %v1957 = vrot.slane %v1909, 7
    %v1958 = vrot.slane %v1910, 7
    %v1959 = vrot.slane %v1911, 7
    %v1960 = vrot.slane %v1912, 7
    %v1961 = vrot.slane %v1913, 7
    %v1962 = vrot.slane %v1914, 7
    %v1963 = vrot.slane %v1915, 7
    %v1964 = vrot.slane %v1916, 7
    %v1965 = vrot.slane %v1917, 7
    %v1966 = vrot.slane %v1918, 7
    %v1967 = vrot.slane %v1919, 7
    %v1968 = vrot.slane %v1920, 7
    %v1969 = vrot.slane %v1921, 7
    %v1970 = vrot.slane %v1922, 7
    %v1971 = vrot.slane %v1923, 7
    %v1972 = vrot.slane %v1924, 7
    %v1973 = vrot.slane %v1925, 7
    %v1974 = vrot.slane %v1926, 7
    %v1975 = vrot.slane %v1927, 7
    %v1976 = vrot.slane %v1928, 7
    %v1977 = vrot.slane %v1929, 7
    %v1978 = vrot.slane %v1930, 7
    %v1979 = vrot.slane %v1931, 7
    %v1980 = vrot.slane %v1932, 7
    %v1981 = vrot.slane %v1933, 7
    %v1982 = vrot.slane %v1934, 7
    %v1983 = vrot.slane %v1935, 7
    %v1984 = vrot.slane %v1936, 7
    %v1985 = vrot.slane %v1937, 7
    %v1986 = vrot.slane %v1938, 7
    %v1987 = vrot.slane %v1939, 7
    %v1988 = vrot.slane %v1940, 7
    %v1989 = vrot.slane %v1941, 7
    %v1990 = vrot.slane %v1942, 7
    %v1991 = vrot.slane %v1943, 7
    %v1992 = vrot.slane %v1944, 7
    %v1993 = vrot.slane %v1945, 7
    %v1994 = vrot.slane %v1946, 7
    %v1995 = vrot.slane %v1947, 7
    %v1996 = vrot.slane %v1948, 7
    %v1997 = vrot.slane %v1949, 7
    %v1998 = vsel %vm1709, %v1996, %v1997
    %v1999 = vsel %vm1709, %v1995, %v1996
    %v2000 = vsel %vm1709, %v1994, %v1995
    %v2001 = vsel %vm1709, %v1993, %v1994
    %v2002 = vsel %vm1709, %v1992, %v1993
    %v2003 = vsel %vm1709, %v1991, %v1992
    %v2004 = vsel %vm1709, %v1990, %v1991
    %v2005 = vsel %vm1709, %v1989, %v1990
    %v2006 = vsel %vm1709, %v1988, %v1989
    %v2007 = vsel %vm1709, %v1987, %v1988
    %v2008 = vsel %vm1709, %v1986, %v1987
    %v2009 = vsel %vm1709, %v1985, %v1986
    %v2010 = vsel %vm1709, %v1984, %v1985
    %v2011 = vsel %vm1709, %v1983, %v1984
    %v2012 = vsel %vm1709, %v1982, %v1983
    %v2013 = vsel %vm1709, %v1981, %v1982
    %v2014 = vsel %vm1709, %v1980, %v1981
    %v2015 = vsel %vm1709, %v1979, %v1980
    %v2016 = vsel %vm1709, %v1978, %v1979
    %v2017 = vsel %vm1709, %v1977, %v1978
    %v2018 = vsel %vm1709, %v1976, %v1977
    %v2019 = vsel %vm1709, %v1975, %v1976
    %v2020 = vsel %vm1709, %v1974, %v1975
    %v2021 = vsel %vm1709, %v1973, %v1974
    %v2022 = vsel %vm1709, %v1972, %v1973
    %v2023 = vsel %vm1709, %v1971, %v1972
    %v2024 = vsel %vm1709, %v1970, %v1971
    %v2025 = vsel %vm1709, %v1969, %v1970
    %v2026 = vsel %vm1709, %v1968, %v1969
    %v2027 = vsel %vm1709, %v1967, %v1968
    %v2028 = vsel %vm1709, %v1966, %v1967
    %v2029 = vsel %vm1709, %v1965, %v1966
    %v2030 = vsel %vm1709, %v1964, %v1965
    %v2031 = vsel %vm1709, %v1963, %v1964
    %v2032 = vsel %vm1709, %v1962, %v1963
    %v2033 = vsel %vm1709, %v1961, %v1962
    %v2034 = vsel %vm1709, %v1960, %v1961
    %v2035 = vsel %vm1709, %v1959, %v1960
    %v2036 = vsel %vm1709, %v1958, %v1959
    %v2037 = vsel %vm1709, %v1957, %v1958
    %v2038 = vsel %vm1709, %v1956, %v1957
    %v2039 = vsel %vm1709, %v1955, %v1956
    %v2040 = vsel %vm1709, %v1954, %v1955
    %v2041 = vsel %vm1709, %v1953, %v1954
    %v2042 = vsel %vm1709, %v1952, %v1953
    %v2043 = vsel %vm1709, %v1951, %v1952
    %v2044 = vsel %vm1709, %v1950, %v1951
    %v2045 = vsel %vm1709, %v1997, %v1950
    %v2046 = vsel %vm1610, -1.0, %v2045
    %v2047 = vsel %vm1611, -1.0, %v2044
    %v2048 = vsel %vm1612, -1.0, %v2043
    %v2049 = vsel %vm1613, -1.0, %v2042
    %v2050 = vsel %vm1614, -1.0, %v2041
    %v2051 = vsel %vm1615, -1.0, %v2040
    %v2052 = vsel %vm1616, -1.0, %v2039
    %v2053 = vsel %vm1617, -1.0, %v2038
    %v2054 = vsel %vm1618, -1.0, %v2037
    %v2055 = vsel %vm1619, -1.0, %v2036
    %v2056 = vsel %vm1620, -1.0, %v2035
    %v2057 = vsel %vm1621, -1.0, %v2034
    %v2058 = vsel %vm1622, -1.0, %v2033
    %v2059 = vsel %vm1623, -1.0, %v2032
    %v2060 = vsel %vm1624, -1.0, %v2031
    %v2061 = vsel %vm1625, -1.0, %v2030
    %v2062 = vsel %vm1626, -1.0, %v2029
    %v2063 = vsel %vm1627, -1.0, %v2028
    %v2064 = vsel %vm1628, -1.0, %v2027
    %v2065 = vsel %vm1629, -1.0, %v2026
    %v2066 = vsel %vm1630, -1.0, %v2025
    %v2067 = vsel %vm1631, -1.0, %v2024
    %v2068 = vsel %vm1632, -1.0, %v2023
    %v2069 = vsel %vm1633, -1.0, %v2022
    %v2070 = vsel %vm1634, -1.0, %v2021
    %v2071 = vsel %vm1635, -1.0, %v2020
    %v2072 = vsel %vm1636, -1.0, %v2019
    %v2073 = vsel %vm1637, -1.0, %v2018
    %v2074 = vsel %vm1638, -1.0, %v2017
    %v2075 = vsel %vm1639, -1.0, %v2016
    %v2076 = vsel %vm1640, -1.0, %v2015
    %v2077 = vsel %vm1641, -1.0, %v2014
    %v2078 = vsel %vm1642, -1.0, %v2013
    %v2079 = vsel %vm1643, -1.0, %v2012
    %v2080 = vsel %vm1644, -1.0, %v2011
    %v2081 = vsel %vm1645, -1.0, %v2010
    %v2082 = vsel %vm1646, -1.0, %v2009
    %v2083 = vsel %vm1647, -1.0, %v2008
    %v2084 = vsel %vm1648, -1.0, %v2007
    %v2085 = vsel %vm1649, -1.0, %v2006
    %v2086 = vsel %vm1650, -1.0, %v2005
    %v2087 = vsel %vm1651, -1.0, %v2004
    %v2088 = vsel %vm1652, -1.0, %v2003
    %v2089 = vsel %vm1653, -1.0, %v2002
    %v2090 = vsel %vm1654, -1.0, %v2001
    %v2091 = vsel %vm1655, -1.0, %v2000
    %v2092 = vsel %vm1656, -1.0, %v1999
    %v2093 = vsel %vm1657, -1.0, %v1998
    %v2094 = vmax.f32 %v279, %v1758
    %v2095 = vmax.f32 %v294, %v1759
    %v2096 = vmax.f32 %v309, %v1760
    %v2097 = vmax.f32 %v324, %v1761
    %v2098 = vmax.f32 %v339, %v1762
    %v2099 = vmax.f32 %v354, %v1763
    %v2100 = vmax.f32 %v369, %v1764
    %v2101 = vmax.f32 %v384, %v1765
    %v2102 = vmax.f32 %v399, %v1766
    %v2103 = vmax.f32 %v414, %v1767
    %v2104 = vmax.f32 %v429, %v1768
    %v2105 = vmax.f32 %v444, %v1769
    %v2106 = vmax.f32 %v459, %v1770
    %v2107 = vmax.f32 %v474, %v1771
    %v2108 = vmax.f32 %v489, %v1772
    %v2109 = vmax.f32 %v504, %v1773
    %v2110 = vmax.f32 %v519, %v1774
    %v2111 = vmax.f32 %v534, %v1775
    %v2112 = vmax.f32 %v549, %v1776
    %v2113 = vmax.f32 %v564, %v1777
    %v2114 = vmax.f32 %v579, %v1778
    %v2115 = vmax.f32 %v594, %v1779
    %v2116 = vmax.f32 %v609, %v1780
    %v2117 = vmax.f32 %v624, %v1781
    %v2118 = vmax.f32 %v639, %v1782
    %v2119 = vmax.f32 %v654, %v1783
    %v2120 = vmax.f32 %v669, %v1784
    %v2121 = vmax.f32 %v684, %v1785
    %v2122 = vmax.f32 %v699, %v1786
    %v2123 = vmax.f32 %v714, %v1787
    %v2124 = vmax.f32 %v729, %v1788
    %v2125 = vmax.f32 %v744, %v1789
    %v2126 = vmax.f32 %v759, %v1790
    %v2127 = vmax.f32 %v774, %v1791
    %v2128 = vmax.f32 %v789, %v1792
    %v2129 = vmax.f32 %v804, %v1793
    %v2130 = vmax.f32 %v819, %v1794
    %v2131 = vmax.f32 %v834, %v1795
    %v2132 = vmax.f32 %v849, %v1796
    %v2133 = vmax.f32 %v864, %v1797
    %v2134 = vmax.f32 %v879, %v1798
    %v2135 = vmax.f32 %v894, %v1799
    %v2136 = vmax.f32 %v909, %v1800
    %v2137 = vmax.f32 %v924, %v1801
    %v2138 = vmax.f32 %v939, %v1802
    %v2139 = vmax.f32 %v954, %v1803
    %v2140 = vmax.f32 %v969, %v1804
    %v2141 = vmax.f32 %v984, %v1805
    %v2142 = vmax.f32 %v1902, %v2046
    %v2143 = vmax.f32 %v1903, %v2047
    %v2144 = vmax.f32 %v1904, %v2048
    %v2145 = vmax.f32 %v1905, %v2049
    %v2146 = vmax.f32 %v1906, %v2050
    %v2147 = vmax.f32 %v1907, %v2051
    %v2148 = vmax.f32 %v1908, %v2052
    %v2149 = vmax.f32 %v1909, %v2053
    %v2150 = vmax.f32 %v1910, %v2054
    %v2151 = vmax.f32 %v1911, %v2055
    %v2152 = vmax.f32 %v1912, %v2056
    %v2153 = vmax.f32 %v1913, %v2057
    %v2154 = vmax.f32 %v1914, %v2058
    %v2155 = vmax.f32 %v1915, %v2059
    %v2156 = vmax.f32 %v1916, %v2060
    %v2157 = vmax.f32 %v1917, %v2061
    %v2158 = vmax.f32 %v1918, %v2062
    %v2159 = vmax.f32 %v1919, %v2063
    %v2160 = vmax.f32 %v1920, %v2064
    %v2161 = vmax.f32 %v1921, %v2065
    %v2162 = vmax.f32 %v1922, %v2066
    %v2163 = vmax.f32 %v1923, %v2067
    %v2164 = vmax.f32 %v1924, %v2068
    %v2165 = vmax.f32 %v1925, %v2069
    %v2166 = vmax.f32 %v1926, %v2070
    %v2167 = vmax.f32 %v1927, %v2071
    %v2168 = vmax.f32 %v1928, %v2072
    %v2169 = vmax.f32 %v1929, %v2073
    %v2170 = vmax.f32 %v1930, %v2074
    %v2171 = vmax.f32 %v1931, %v2075
    %v2172 = vmax.f32 %v1932, %v2076
    %v2173 = vmax.f32 %v1933, %v2077
    %v2174 = vmax.f32 %v1934, %v2078
    %v2175 = vmax.f32 %v1935, %v2079
    %v2176 = vmax.f32 %v1936, %v2080
    %v2177 = vmax.f32 %v1937, %v2081
    %v2178 = vmax.f32 %v1938, %v2082
    %v2179 = vmax.f32 %v1939, %v2083
    %v2180 = vmax.f32 %v1940, %v2084
    %v2181 = vmax.f32 %v1941, %v2085
    %v2182 = vmax.f32 %v1942, %v2086
    %v2183 = vmax.f32 %v1943, %v2087
    %v2184 = vmax.f32 %v1944, %v2088
    %v2185 = vmax.f32 %v1945, %v2089
    %v2186 = vmax.f32 %v1946, %v2090
    %v2187 = vmax.f32 %v1947, %v2091
    %v2188 = vmax.f32 %v1948, %v2092
    %v2189 = vmax.f32 %v1949, %v2093
    %v2190 = vmax.f32 %v2094, %v2142
    %v2191 = vmax.f32 %v2095, %v2143
    %v2192 = vmax.f32 %v2096, %v2144
    %v2193 = vmax.f32 %v2097, %v2145
    %v2194 = vmax.f32 %v2098, %v2146
    %v2195 = vmax.f32 %v2099, %v2147
    %v2196 = vmax.f32 %v2100, %v2148
    %v2197 = vmax.f32 %v2101, %v2149
    %v2198 = vmax.f32 %v2102, %v2150
    %v2199 = vmax.f32 %v2103, %v2151
    %v2200 = vmax.f32 %v2104, %v2152
    %v2201 = vmax.f32 %v2105, %v2153
    %v2202 = vmax.f32 %v2106, %v2154
    %v2203 = vmax.f32 %v2107, %v2155
    %v2204 = vmax.f32 %v2108, %v2156
    %v2205 = vmax.f32 %v2109, %v2157
    %v2206 = vmax.f32 %v2110, %v2158
    %v2207 = vmax.f32 %v2111, %v2159
    %v2208 = vmax.f32 %v2112, %v2160
    %v2209 = vmax.f32 %v2113, %v2161
    %v2210 = vmax.f32 %v2114, %v2162
    %v2211 = vmax.f32 %v2115, %v2163
    %v2212 = vmax.f32 %v2116, %v2164
    %v2213 = vmax.f32 %v2117, %v2165
    %v2214 = vmax.f32 %v2118, %v2166
    %v2215 = vmax.f32 %v2119, %v2167
    %v2216 = vmax.f32 %v2120, %v2168
    %v2217 = vmax.f32 %v2121, %v2169
    %v2218 = vmax.f32 %v2122, %v2170
    %v2219 = vmax.f32 %v2123, %v2171
    %v2220 = vmax.f32 %v2124, %v2172
    %v2221 = vmax.f32 %v2125, %v2173
    %v2222 = vmax.f32 %v2126, %v2174
    %v2223 = vmax.f32 %v2127, %v2175
    %v2224 = vmax.f32 %v2128, %v2176
    %v2225 = vmax.f32 %v2129, %v2177
    %v2226 = vmax.f32 %v2130, %v2178
    %v2227 = vmax.f32 %v2131, %v2179
    %v2228 = vmax.f32 %v2132, %v2180
    %v2229 = vmax.f32 %v2133, %v2181
    %v2230 = vmax.f32 %v2134, %v2182
    %v2231 = vmax.f32 %v2135, %v2183
    %v2232 = vmax.f32 %v2136, %v2184
    %v2233 = vmax.f32 %v2137, %v2185
    %v2234 = vmax.f32 %v2138, %v2186
    %v2235 = vmax.f32 %v2139, %v2187
    %v2236 = vmax.f32 %v2140, %v2188
    %v2237 = vmax.f32 %v2141, %v2189
    %vm2238 = vcmp.eq.f32.partialorder %v2190, %v279
    %vm2239 = vcmp.eq.f32.partialorder %v2191, %v294
    %vm2240 = vcmp.eq.f32.partialorder %v2192, %v309
    %vm2241 = vcmp.eq.f32.partialorder %v2193, %v324
    %vm2242 = vcmp.eq.f32.partialorder %v2194, %v339
    %vm2243 = vcmp.eq.f32.partialorder %v2195, %v354
    %vm2244 = vcmp.eq.f32.partialorder %v2196, %v369
    %vm2245 = vcmp.eq.f32.partialorder %v2197, %v384
    %vm2246 = vcmp.eq.f32.partialorder %v2198, %v399
    %vm2247 = vcmp.eq.f32.partialorder %v2199, %v414
    %vm2248 = vcmp.eq.f32.partialorder %v2200, %v429
    %vm2249 = vcmp.eq.f32.partialorder %v2201, %v444
    %vm2250 = vcmp.eq.f32.partialorder %v2202, %v459
    %vm2251 = vcmp.eq.f32.partialorder %v2203, %v474
    %vm2252 = vcmp.eq.f32.partialorder %v2204, %v489
    %vm2253 = vcmp.eq.f32.partialorder %v2205, %v504
    %vm2254 = vcmp.eq.f32.partialorder %v2206, %v519
    %vm2255 = vcmp.eq.f32.partialorder %v2207, %v534
    %vm2256 = vcmp.eq.f32.partialorder %v2208, %v549
    %vm2257 = vcmp.eq.f32.partialorder %v2209, %v564
    %vm2258 = vcmp.eq.f32.partialorder %v2210, %v579
    %vm2259 = vcmp.eq.f32.partialorder %v2211, %v594
    %vm2260 = vcmp.eq.f32.partialorder %v2212, %v609
    %vm2261 = vcmp.eq.f32.partialorder %v2213, %v624
    %vm2262 = vcmp.eq.f32.partialorder %v2214, %v639
    %vm2263 = vcmp.eq.f32.partialorder %v2215, %v654
    %vm2264 = vcmp.eq.f32.partialorder %v2216, %v669
    %vm2265 = vcmp.eq.f32.partialorder %v2217, %v684
    %vm2266 = vcmp.eq.f32.partialorder %v2218, %v699
    %vm2267 = vcmp.eq.f32.partialorder %v2219, %v714
    %vm2268 = vcmp.eq.f32.partialorder %v2220, %v729
    %vm2269 = vcmp.eq.f32.partialorder %v2221, %v744
    %vm2270 = vcmp.eq.f32.partialorder %v2222, %v759
    %vm2271 = vcmp.eq.f32.partialorder %v2223, %v774
    %vm2272 = vcmp.eq.f32.partialorder %v2224, %v789
    %vm2273 = vcmp.eq.f32.partialorder %v2225, %v804
    %vm2274 = vcmp.eq.f32.partialorder %v2226, %v819
    %vm2275 = vcmp.eq.f32.partialorder %v2227, %v834
    %vm2276 = vcmp.eq.f32.partialorder %v2228, %v849
    %vm2277 = vcmp.eq.f32.partialorder %v2229, %v864
    %vm2278 = vcmp.eq.f32.partialorder %v2230, %v879
    %vm2279 = vcmp.eq.f32.partialorder %v2231, %v894
    %vm2280 = vcmp.eq.f32.partialorder %v2232, %v909
    %vm2281 = vcmp.eq.f32.partialorder %v2233, %v924
    %vm2282 = vcmp.eq.f32.partialorder %v2234, %v939
    %vm2283 = vcmp.eq.f32.partialorder %v2235, %v954
    %vm2284 = vcmp.eq.f32.partialorder %v2236, %v969
    %vm2285 = vcmp.eq.f32.partialorder %v2237, %v984
    %v2286 = vsel %vm2238, 1, 0
    %v2287 = vsel %vm2239, 1, 0
    %v2288 = vsel %vm2240, 1, 0
    %v2289 = vsel %vm2241, 1, 0
    %v2290 = vsel %vm2242, 1, 0
    %v2291 = vsel %vm2243, 1, 0
    %v2292 = vsel %vm2244, 1, 0
    %v2293 = vsel %vm2245, 1, 0
    %v2294 = vsel %vm2246, 1, 0
    %v2295 = vsel %vm2247, 1, 0
    %v2296 = vsel %vm2248, 1, 0
    %v2297 = vsel %vm2249, 1, 0
    %v2298 = vsel %vm2250, 1, 0
    %v2299 = vsel %vm2251, 1, 0
    %v2300 = vsel %vm2252, 1, 0
    %v2301 = vsel %vm2253, 1, 0
    %v2302 = vsel %vm2254, 1, 0
    %v2303 = vsel %vm2255, 1, 0
    %v2304 = vsel %vm2256, 1, 0
    %v2305 = vsel %vm2257, 1, 0
    %v2306 = vsel %vm2258, 1, 0
    %v2307 = vsel %vm2259, 1, 0
    %v2308 = vsel %vm2260, 1, 0
    %v2309 = vsel %vm2261, 1, 0
    %v2310 = vsel %vm2262, 1, 0
    %v2311 = vsel %vm2263, 1, 0
    %v2312 = vsel %vm2264, 1, 0
    %v2313 = vsel %vm2265, 1, 0
    %v2314 = vsel %vm2266, 1, 0
    %v2315 = vsel %vm2267, 1, 0
    %v2316 = vsel %vm2268, 1, 0
    %v2317 = vsel %vm2269, 1, 0
    %v2318 = vsel %vm2270, 1, 0
    %v2319 = vsel %vm2271, 1, 0
    %v2320 = vsel %vm2272, 1, 0
    %v2321 = vsel %vm2273, 1, 0
    %v2322 = vsel %vm2274, 1, 0
    %v2323 = vsel %vm2275, 1, 0
    %v2324 = vsel %vm2276, 1, 0
    %v2325 = vsel %vm2277, 1, 0
    %v2326 = vsel %vm2278, 1, 0
    %v2327 = vsel %vm2279, 1, 0
    %v2328 = vsel %vm2280, 1, 0
    %v2329 = vsel %vm2281, 1, 0
    %v2330 = vsel %vm2282, 1, 0
    %v2331 = vsel %vm2283, 1, 0
    %v2332 = vsel %vm2284, 1, 0
    %v2333 = vsel %vm2285, 1, 0
    %v2334 = vcvt.s32.f32 %v2286
    %v2335 = vcvt.s32.f32 %v2287
    %v2336 = vcvt.s32.f32 %v2288
    %v2337 = vcvt.s32.f32 %v2289
    %v2338 = vcvt.s32.f32 %v2290
    %v2339 = vcvt.s32.f32 %v2291
    %v2340 = vcvt.s32.f32 %v2292
    %v2341 = vcvt.s32.f32 %v2293
    %v2342 = vcvt.s32.f32 %v2294
    %v2343 = vcvt.s32.f32 %v2295
    %v2344 = vcvt.s32.f32 %v2296
    %v2345 = vcvt.s32.f32 %v2297
    %v2346 = vcvt.s32.f32 %v2298
    %v2347 = vcvt.s32.f32 %v2299
    %v2348 = vcvt.s32.f32 %v2300
    %v2349 = vcvt.s32.f32 %v2301
    %v2350 = vcvt.s32.f32 %v2302
    %v2351 = vcvt.s32.f32 %v2303
    %v2352 = vcvt.s32.f32 %v2304
    %v2353 = vcvt.s32.f32 %v2305
    %v2354 = vcvt.s32.f32 %v2306
    %v2355 = vcvt.s32.f32 %v2307
    %v2356 = vcvt.s32.f32 %v2308
    %v2357 = vcvt.s32.f32 %v2309
    %v2358 = vcvt.s32.f32 %v2310
    %v2359 = vcvt.s32.f32 %v2311
    %v2360 = vcvt.s32.f32 %v2312
    %v2361 = vcvt.s32.f32 %v2313
    %v2362 = vcvt.s32.f32 %v2314
    %v2363 = vcvt.s32.f32 %v2315
    %v2364 = vcvt.s32.f32 %v2316
    %v2365 = vcvt.s32.f32 %v2317
    %v2366 = vcvt.s32.f32 %v2318
    %v2367 = vcvt.s32.f32 %v2319
    %v2368 = vcvt.s32.f32 %v2320
    %v2369 = vcvt.s32.f32 %v2321
    %v2370 = vcvt.s32.f32 %v2322
    %v2371 = vcvt.s32.f32 %v2323
    %v2372 = vcvt.s32.f32 %v2324
    %v2373 = vcvt.s32.f32 %v2325
    %v2374 = vcvt.s32.f32 %v2326
    %v2375 = vcvt.s32.f32 %v2327
    %v2376 = vcvt.s32.f32 %v2328
    %v2377 = vcvt.s32.f32 %v2329
    %v2378 = vcvt.s32.f32 %v2330
    %v2379 = vcvt.s32.f32 %v2331
    %v2380 = vcvt.s32.f32 %v2332
    %v2381 = vcvt.s32.f32 %v2333
    %v2382 = vmul.f32 %v279, %v2334
    %v2383 = vmul.f32 %v294, %v2335
    %v2384 = vmul.f32 %v309, %v2336
    %v2385 = vmul.f32 %v324, %v2337
    %v2386 = vmul.f32 %v339, %v2338
    %v2387 = vmul.f32 %v354, %v2339
    %v2388 = vmul.f32 %v369, %v2340
    %v2389 = vmul.f32 %v384, %v2341
    %v2390 = vmul.f32 %v399, %v2342
    %v2391 = vmul.f32 %v414, %v2343
    %v2392 = vmul.f32 %v429, %v2344
    %v2393 = vmul.f32 %v444, %v2345
    %v2394 = vmul.f32 %v459, %v2346
    %v2395 = vmul.f32 %v474, %v2347
    %v2396 = vmul.f32 %v489, %v2348
    %v2397 = vmul.f32 %v504, %v2349
    %v2398 = vmul.f32 %v519, %v2350
    %v2399 = vmul.f32 %v534, %v2351
    %v2400 = vmul.f32 %v549, %v2352
    %v2401 = vmul.f32 %v564, %v2353
    %v2402 = vmul.f32 %v579, %v2354
    %v2403 = vmul.f32 %v594, %v2355
    %v2404 = vmul.f32 %v609, %v2356
    %v2405 = vmul.f32 %v624, %v2357
    %v2406 = vmul.f32 %v639, %v2358
    %v2407 = vmul.f32 %v654, %v2359
    %v2408 = vmul.f32 %v669, %v2360
    %v2409 = vmul.f32 %v684, %v2361
    %v2410 = vmul.f32 %v699, %v2362
    %v2411 = vmul.f32 %v714, %v2363
    %v2412 = vmul.f32 %v729, %v2364
    %v2413 = vmul.f32 %v744, %v2365
    %v2414 = vmul.f32 %v759, %v2366
    %v2415 = vmul.f32 %v774, %v2367
    %v2416 = vmul.f32 %v789, %v2368
    %v2417 = vmul.f32 %v804, %v2369
    %v2418 = vmul.f32 %v819, %v2370
    %v2419 = vmul.f32 %v834, %v2371
    %v2420 = vmul.f32 %v849, %v2372
    %v2421 = vmul.f32 %v864, %v2373
    %v2422 = vmul.f32 %v879, %v2374
    %v2423 = vmul.f32 %v894, %v2375
    %v2424 = vmul.f32 %v909, %v2376
    %v2425 = vmul.f32 %v924, %v2377
    %v2426 = vmul.f32 %v939, %v2378
    %v2427 = vmul.f32 %v954, %v2379
    %v2428 = vmul.f32 %v969, %v2380
    %v2429 = vmul.f32 %v984, %v2381
    %2430 = vst [vmem:[#allocation5] sm:$0xff] %v2382
    %2431 = vst [vmem:[#allocation5 + $0x8] sm:$0xff] %v2383
    %2432 = vst [vmem:[#allocation5 + $0x10] sm:$0xff] %v2384
    %2433 = vst [vmem:[#allocation5 + $0x18] sm:$0xff] %v2385
    %2434 = vst [vmem:[#allocation5 + $0x20] sm:$0xff] %v2386
    %2435 = vst [vmem:[#allocation5 + $0x28] sm:$0xff] %v2387
    %2436 = vst [vmem:[#allocation5 + $0x30] sm:$0xff] %v2388
    %2437 = vst [vmem:[#allocation5 + $0x38] sm:$0xff] %v2389
    %2438 = vst [vmem:[#allocation5 + $0x40] sm:$0xff] %v2390
    %2439 = vst [vmem:[#allocation5 + $0x48] sm:$0xff] %v2391
    %2440 = vst [vmem:[#allocation5 + $0x50] sm:$0xff] %v2392
    %2441 = vst [vmem:[#allocation5 + $0x58] sm:$0xff] %v2393
    %2442 = vst [vmem:[#allocation5 + $0x60] sm:$0xff] %v2394
    %2443 = vst [vmem:[#allocation5 + $0x68] sm:$0xff] %v2395
    %2444 = vst [vmem:[#allocation5 + $0x70] sm:$0xff] %v2396
    %2445 = vst [vmem:[#allocation5 + $0x78] sm:$0xff] %v2397
    %2446 = vst [vmem:[#allocation5 + $0x80] sm:$0xff] %v2398
    %2447 = vst [vmem:[#allocation5 + $0x88] sm:$0xff] %v2399
    %2448 = vst [vmem:[#allocation5 + $0x90] sm:$0xff] %v2400
    %2449 = vst [vmem:[#allocation5 + $0x98] sm:$0xff] %v2401
    %2450 = vst [vmem:[#allocation5 + $0xa0] sm:$0xff] %v2402
    %2451 = vst [vmem:[#allocation5 + $0xa8] sm:$0xff] %v2403
    %2452 = vst [vmem:[#allocation5 + $0xb0] sm:$0xff] %v2404
    %2453 = vst [vmem:[#allocation5 + $0xb8] sm:$0xff] %v2405
    %2454 = vst [vmem:[#allocation5 + $0xc0] sm:$0xff] %v2406
    %2455 = vst [vmem:[#allocation5 + $0xc8] sm:$0xff] %v2407
    %2456 = vst [vmem:[#allocation5 + $0xd0] sm:$0xff] %v2408
    %2457 = vst [vmem:[#allocation5 + $0xd8] sm:$0xff] %v2409
    %2458 = vst [vmem:[#allocation5 + $0xe0] sm:$0xff] %v2410
    %2459 = vst [vmem:[#allocation5 + $0xe8] sm:$0xff] %v2411
    %2460 = vst [vmem:[#allocation5 + $0xf0] sm:$0xff] %v2412
    %2461 = vst [vmem:[#allocation5 + $0xf8] sm:$0xff] %v2413
    %2462 = vst [vmem:[#allocation5 + $0x100] sm:$0xff] %v2414
    %2463 = vst [vmem:[#allocation5 + $0x108] sm:$0xff] %v2415
    %2464 = vst [vmem:[#allocation5 + $0x110] sm:$0xff] %v2416
    %2465 = vst [vmem:[#allocation5 + $0x118] sm:$0xff] %v2417
    %2466 = vst [vmem:[#allocation5 + $0x120] sm:$0xff] %v2418
    %2467 = vst [vmem:[#allocation5 + $0x128] sm:$0xff] %v2419
    %2468 = vst [vmem:[#allocation5 + $0x130] sm:$0xff] %v2420
    %2469 = vst [vmem:[#allocation5 + $0x138] sm:$0xff] %v2421
    %2470 = vst [vmem:[#allocation5 + $0x140] sm:$0xff] %v2422
    %2471 = vst [vmem:[#allocation5 + $0x148] sm:$0xff] %v2423
    %2472 = vst [vmem:[#allocation5 + $0x150] sm:$0xff] %v2424
    %2473 = vst [vmem:[#allocation5 + $0x158] sm:$0xff] %v2425
    %2474 = vst [vmem:[#allocation5 + $0x160] sm:$0xff] %v2426
    %2475 = vst [vmem:[#allocation5 + $0x168] sm:$0xff] %v2427
    %2476 = vst [vmem:[#allocation5 + $0x170] sm:$0xff] %v2428
    %2477 = vst [vmem:[#allocation5 + $0x178] sm:$0xff] %v2429
    // Predicated region
    $region10: #{tpu_custom_call.1} parent=1 // pred_check
      _
    $region11: #{tpu_custom_call.1} parent=1 // pred_check_branch
      %2479 = sbr.rel (0) target = $region13
    $region12: #{tpu_custom_call.1} parent=1 // pred_region
      %2481 = vsyncadd [#allocation4], 0
      %s2482 = sshll.u32 [#allocation5], 4
      %s2483 = int_to_ptr.vmem [resolvable:$true] %s2482
      %s2484 = sshll.u32 %s1, 4
      %s2485 = int_to_ptr.hbm [resolvable:$true] %s2484
      %2490 = dma.vmem_to_hbm [thread:$0]  %s2483, 6144, %s2485, [#allocation4], 128, 128, 8
    $region13: #{tpu_custom_call.1} parent=1 // pred_fallthru
      _
    // Predicated region
    $region14: #{tpu_custom_call.1} parent=1 // pred_check
      _
    $region15: #{tpu_custom_call.1} parent=1 // pred_check_branch
      %2492 = sbr.rel (0) target = $region17
    $region16: #{tpu_custom_call.1} parent=1 // pred_region
      %2494 = dma.done [#allocation4], 6144
    $region17: #{tpu_custom_call.1} parent=1 // pred_fallthru
      _
    %2495 = vsyncpa [#allocation3], 1
    %2496 = vsyncpa [#allocation4], 1

</llo_original>
